<compile_context>
chip_gen: v7x
topology: tpu7x:2x2x1
jax: 0.10.0
libtpu: 0.0.40
codegen_flags: <defaults>
</compile_context>

<pallas_src>
import functools

import jax
import jax.numpy as jnp
from jax.experimental import pallas as pl
from jax.experimental.pallas import tpu as pltpu


def _round_up(x, m):
    return ((x + m - 1) // m) * m


def _mm(a, w):
    # bf16 MXU inputs, f32 accumulate.
    return jnp.dot(a.astype(jnp.bfloat16), w, preferred_element_type=jnp.float32)


# ---------------------------------------------------------------------------
# Kernel 1: batched gsn_0 encode + fused BCE cost (input-only, no recurrence).
# ---------------------------------------------------------------------------
def _encode_kernel(x_ref, mask_ref, w0v_ref, w0h_ref, bh1_ref, wout_ref,
                   bout_ref, h0_ref, cost_ref, *, wb, M, PH, PV, inv_norm):
    x = x_ref[...]                            # (M, PV) f32, all T timesteps
    mask = mask_ref[...]                      # 1.0 on valid (row, feature)
    w0v, w0h, wout = w0v_ref[...], w0h_ref[...], wout_ref[...]
    bh1 = jnp.broadcast_to(bh1_ref[...], (M, PH))
    bout = jnp.broadcast_to(bout_ref[...], (M, PH + PV))

    v = x
    h2 = None
    h1 = None
    loss = jnp.zeros((M, PV), jnp.float32)
    for k in range(wb):
        pre = _mm(v, w0v) + bh1
        if k > 0:                              # h2 == 0 on the first walkback
            pre = pre + _mm(h2, w0h)
        h1 = jnp.maximum(pre, 0.0)             # hidden act: relu
        out = _mm(h1, wout) + bout             # [h2 | v] in one fat matmul
        h2 = jnp.maximum(out[:, :PH], 0.0)
        v = jax.nn.sigmoid(out[:, PH:])        # visible act: sigmoid
        # BCE (PyTorch F.binary_cross_entropy: log clamp at -100, mean reduce)
        logp = jnp.maximum(jnp.log(v), -100.0)
        log1mp = jnp.maximum(jnp.log(1.0 - v), -100.0)
        loss = loss - (x * logp + (1.0 - x) * log1mp)

    loss = loss * mask
    s = jnp.sum(loss, axis=1, keepdims=True)
    s = jnp.sum(s, axis=0, keepdims=True)
    cost_ref[...] = s * inv_norm
    h0_ref[...] = h1                           # h_0[t] for every t, batched


# ---------------------------------------------------------------------------
# Kernel 2: the serial recurrence (lstm_0 -> gsn_1 enc -> lstm_1 -> linear_1
# -> gsn_1 dec -> split).  grid=(T,), carries in VMEM scratch.
# ---------------------------------------------------------------------------
def _recurrent_kernel(h0_ref,
                      w1v_ref, w1h_ref, bh1_ref, wout_ref, bout_ref,
                      wl0x_ref, wl0h_ref, bl0_ref,
                      wl1x_ref, wl1h_ref, bl1_ref,
                      wlin1_ref, blin1_ref,
                      l0h_out_ref,
                      l0h_ref, l0c_ref, l1h_ref, l1c_ref,
                      *, wb1, rnn, PB, PH1, PV1):
    t = pl.program_id(0)

    @pl.when(t == 0)
    def _():
        l0h_ref[...] = jnp.zeros_like(l0h_ref)
        l0c_ref[...] = jnp.zeros_like(l0c_ref)
        l1h_ref[...] = jnp.zeros_like(l1h_ref)
        l1c_ref[...] = jnp.zeros_like(l1c_ref)

    # Hoist weight loads / bias broadcasts / lane masks out of the loops.
    w1v, w1h, wout = w1v_ref[...], w1h_ref[...], wout_ref[...]
    wl0x, wl0h = wl0x_ref[...], wl0h_ref[...]
    wl1x, wl1h = wl1x_ref[...], wl1h_ref[...]
    wlin1 = wlin1_ref[...]
    bh1 = jnp.broadcast_to(bh1_ref[...], (PB, PH1))
    bout = jnp.broadcast_to(bout_ref[...], (PB, PH1 + PV1))
    bl0 = jnp.broadcast_to(bl0_ref[...], (PB, 128))
    bl1 = jnp.broadcast_to(bl1_ref[...], (PB, 128))
    blin1 = jnp.broadcast_to(blin1_ref[...], (PB, PH1))

    lane = jax.lax.broadcasted_iota(jnp.int32, (PB, 128), 1)
    m_h = lane < rnn                              # carry lanes (h / c live here)
    m_g = (lane >= 2 * rnn) & (lane < 3 * rnn)    # tanh ("g") gate lanes

    # LSTM cell with i|f|g|o packed into one 128-lane group: a single N=128
    # matmul per operand; gate extraction/realignment via XLU rolls + VPU
    # selects (off the MXU critical path).
    def lstm(x_in, h, c, wx, wh, b):
        gates = _mm(x_in, wx) + _mm(h, wh) + b
        act = jnp.where(m_g, jnp.tanh(gates), jax.nn.sigmoid(gates))
        f_al = pltpu.roll(act, 128 - rnn, axis=1)
        g_al = pltpu.roll(act, 128 - 2 * rnn, axis=1)
        o_al = pltpu.roll(act, 128 - 3 * rnn, axis=1)
        c_new = jnp.where(m_h, f_al * c + act * g_al, 0.0)   # keep lanes clean
        h_new = o_al * jnp.tanh(c_new)                       # clean via tanh(0)=0
        return h_new, c_new

    def gsn1_h1(v, h2, first):
        pre = _mm(v, w1v) + bh1
        if not first:
            pre = pre + _mm(h2, w1h)
        return jnp.maximum(pre, 0.0)                         # hidden: relu

    def gsn1_out(h1):
        out = _mm(h1, wout) + bout
        return jnp.maximum(out[:, :PH1], 0.0), jnp.tanh(out[:, PH1:])  # h2, v

    x0 = h0_ref[0]                                           # (PB, PH0)

    # ---- lstm_0 (carry = split(next_h1) from the previous step) ----
    h0l, c0l = lstm(x0, l0h_ref[...], l0c_ref[...], wl0x, wl0h, bl0)
    # h_1 = torch.cat([h, c], dim=1) as a lane shift (no embed matmul).
    h_1 = h0l + pltpu.roll(c0l, rnn, axis=1)

    # ---- gsn_1 encode walkbacks over h_1 ----
    v, h2, h1 = h_1, None, None
    for k in range(wb1):
        h1 = gsn1_h1(v, h2, first=(k == 0))
        h2, v = gsn1_out(h1)
    h_2 = h1

    # ---- lstm_1 (its own recurrence IS the carry) ----
    l1h, l1c = lstm(h_2, l1h_ref[...], l1c_ref[...], wl1x, wl1h, bl1)
    l1h_ref[...] = l1h
    l1c_ref[...] = l1c

    # ---- decode: linear_1 -> gsn_1 walkbacks from hiddens ----
    h1d = _mm(l1h, wlin1) + blin1
    vd = None
    for k in range(wb1):
        h2d, vd = gsn1_out(h1d)
        if k < wb1 - 1:                       # last h1 update is never consumed
            h1d = gsn1_h1(vd, h2d, first=False)
    next_h1 = vd

    # ---- torch.split(next_h1, rnn) -> new lstm_0 carry (lane shift + mask) --
    l0h_new = jnp.where(m_h, next_h1, 0.0)
    l0c_new = jnp.where(m_h, pltpu.roll(next_h1, 128 - rnn, axis=1), 0.0)
    l0h_ref[...] = l0h_new
    l0c_ref[...] = l0c_new
    l0h_out_ref[0] = l0h_new                  # only thing the epilogue needs


# ---------------------------------------------------------------------------
# Kernel 3: batched linear_0 + gsn_0 decode walkbacks (output-only epilogue).
# ---------------------------------------------------------------------------
def _decode_kernel(l0h_ref, wlin0_ref, blin0_ref, w0v_ref, w0h_ref, bh1_ref,
                   wout_ref, bout_ref, tgt_ref, *, wb, M, PH, PV):
    l0h = l0h_ref[...]                         # (M, 128), all T timesteps
    w0v, w0h, wout = w0v_ref[...], w0h_ref[...], wout_ref[...]
    bh1 = jnp.broadcast_to(bh1_ref[...], (M, PH))
    bout = jnp.broadcast_to(bout_ref[...], (M, PH + PV))
    blin0 = jnp.broadcast_to(blin0_ref[...], (M, PH))

    h1 = _mm(l0h, wlin0_ref[...]) + blin0      # linear_0 (no activation)
    for k in range(wb):
        out = _mm(h1, wout) + bout
        h2 = jnp.maximum(out[:, :PH], 0.0)
        v = jax.nn.sigmoid(out[:, PH:])
        tgt_ref[k] = v                         # lane-dense (M, PV) store
        if k < wb - 1:
            h1 = jnp.maximum(_mm(v, w0v) + _mm(h2, w0h) + bh1, 0.0)


# ---------------------------------------------------------------------------
# Host-side parameter construction (padding / packing / bf16 cast done once).
# ---------------------------------------------------------------------------
def xavier_uniform(key, shape, gain=1.0):
    fan_in, fan_out = shape
    bound = gain * (6.0 / (fan_in + fan_out)) ** 0.5
    return jax.random.uniform(key, shape, jnp.float32, -bound, bound)


def _pad2(a, pk, pn):
    k, n = a.shape
    return jnp.zeros((pk, pn), jnp.float32).at[:k, :n].set(a)


def _pad_bias(b, pn):
    return jnp.zeros((1, pn), jnp.float32).at[0, :b.shape[0]].set(b)


class GSNParams:
    """Deterministic (noiseless) 3-layer GSN with tied weights."""

    def __init__(self, key, sizes, walkbacks):
        s0, s1, s2 = sizes
        assert s1 == s2, "GSN here assumes sizes = [v, h, h]"
        k0, k1 = jax.random.split(key)
        self.W0 = xavier_uniform(k0, (s0, s1))
        self.W1 = xavier_uniform(k1, (s1, s2))
        self.b_v = jnp.zeros((s0,), jnp.float32)
        self.b_h1 = jnp.zeros((s1,), jnp.float32)
        self.b_h2 = jnp.zeros((s2,), jnp.float32)
        self.sizes = sizes
        self.walkbacks = walkbacks

    def padded(self, pv, ph):
        s0, s1, s2 = self.sizes
        bf16 = jnp.bfloat16
        # split-K inputs: v -> h1 uses W0, h2 -> h1 uses W1^T (tied weights)
        w_v = _pad2(self.W0, pv, ph).astype(bf16)
        w_h = _pad2(self.W1.T, ph, ph).astype(bf16)
        bh1 = _pad_bias(self.b_h1, ph)
        # h1 -> [h2 | v] : cols 0..ph-1 = W1, cols ph.. = W0^T (one fat matmul)
        wout = jnp.zeros((ph, ph + pv), jnp.float32)
        wout = wout.at[:s1, :s2].set(self.W1)
        wout = wout.at[:s1, ph:ph + s0].set(self.W0.T)
        bout = jnp.zeros((1, ph + pv), jnp.float32)
        bout = bout.at[0, :s2].set(self.b_h2)
        bout = bout.at[0, ph:ph + s0].set(self.b_v)
        return w_v, w_h, bh1, wout.astype(bf16), bout


class SEN:
    def __init__(self, key, in_size, hidden_size, walkbacks=4, rnn_hidden_size=32):
        # Lane-packed gates / cat / split require 4*rnn <= 128 lanes.
        assert 4 * rnn_hidden_size <= 128, "see TODO(synk) at top of file"
        keys = jax.random.split(key, 8)
        self.in_size = in_size
        self.hidden_size = hidden_size
        self.rnn = rnn_hidden_size
        self.wb0 = walkbacks
        self.wb1 = 4
        gain_tanh = 5.0 / 3.0          # nn.init.calculate_gain('tanh')
        gain_relu = 2.0 ** 0.5         # nn.init.calculate_gain('relu')

        self.gsn_0 = GSNParams(keys[0], [in_size, hidden_size, hidden_size], walkbacks)
        g1 = [rnn_hidden_size * 2, int(rnn_hidden_size * 2 * 1.5),
              int(rnn_hidden_size * 2 * 1.5)]
        self.g1 = g1
        self.gsn_1 = GSNParams(keys[4], g1, 4)

        lstm0_wih = xavier_uniform(keys[1], (hidden_size, 4 * rnn_hidden_size), gain_tanh)
        lstm0_whh = xavier_uniform(keys[2], (rnn_hidden_size, 4 * rnn_hidden_size), gain_tanh)
        lstm0_b = jnp.zeros((4 * rnn_hidden_size,), jnp.float32)   # bias_ih + bias_hh = 0
        lin0_w = xavier_uniform(keys[3], (rnn_hidden_size, hidden_size), gain_relu)
        lin0_b = jnp.zeros((hidden_size,), jnp.float32)
        lstm1_wih = xavier_uniform(keys[5], (g1[1], 4 * rnn_hidden_size), gain_tanh)
        lstm1_whh = xavier_uniform(keys[6], (rnn_hidden_size, 4 * rnn_hidden_size), gain_tanh)
        lstm1_b = jnp.zeros((4 * rnn_hidden_size,), jnp.float32)
        lin1_w = xavier_uniform(keys[7], (rnn_hidden_size, g1[1]), gain_relu)
        lin1_b = jnp.zeros((g1[1],), jnp.float32)

        # ------------- padded / packed / bf16 kernel weights ----------------
        self.PH0 = _round_up(hidden_size, 128)
        self.PV0 = _round_up(in_size, 128)
        self.PH1 = _round_up(g1[1], 128)
        self.PV1 = _round_up(g1[0], 128)
        self.PHr = 128                       # carry lane width (one group)

        bf16 = jnp.bfloat16
        self.p_gsn0 = self.gsn_0.padded(self.PV0, self.PH0)
        self.p_gsn1 = self.gsn_1.padded(self.PV1, self.PH1)
        # LSTM gates i|f|g|o packed contiguously into one 128-lane group.
        self.p_lstm0 = (_pad2(lstm0_wih, self.PH0, 128).astype(bf16),
                        _pad2(lstm0_whh, self.PHr, 128).astype(bf16),
                        _pad_bias(lstm0_b, 128))
        self.p_lstm1 = (_pad2(lstm1_wih, self.PH1, 128).astype(bf16),
                        _pad2(lstm1_whh, self.PHr, 128).astype(bf16),
                        _pad_bias(lstm1_b, 128))
        self.p_lin0 = (_pad2(lin0_w, self.PHr, self.PH0).astype(bf16),
                       _pad_bias(lin0_b, self.PH0))
        self.p_lin1 = (_pad2(lin1_w, self.PHr, self.PH1).astype(bf16),
                       _pad_bias(lin1_b, self.PH1))

    def forward(self, xs):
        """xs: [T, B, in_size] -> (sequence_xs, encode_cost, target_recons)."""
        T, B, _ = xs.shape
        PB = _round_up(B, 8)
        M = T * PB
        PV0, PH0, PH1, PV1, PHr = self.PV0, self.PH0, self.PH1, self.PV1, self.PHr
        wb0, wb1 = self.wb0, self.wb1

        x_flat = (jnp.zeros((T, PB, PV0), jnp.float32)
                  .at[:, :B, :self.in_size].set(xs).reshape(M, PV0))
        mask = jnp.tile(jnp.zeros((PB, PV0), jnp.float32)
                        .at[:B, :self.in_size].set(1.0), (T, 1))

        w0v, w0h, bh1_0, wout0, bout0 = self.p_gsn0
        w1v, w1h, bh1_1, wout1, bout1 = self.p_gsn1
        wl0x, wl0h, bl0 = self.p_lstm0
        wl1x, wl1h, bl1 = self.p_lstm1
        wlin0, blin0 = self.p_lin0
        wlin1, blin1 = self.p_lin1

        def resident(a):
            # Whole array, same block every grid step -> DMA'd once, stays in
            # VMEM.  (pl.Buffered(1) would drop the unused second buffer but
            # is negligible at ~2 MB total weights.)
            nd = a.ndim

            def imap(t):
                return (0,) * nd

            return pl.BlockSpec(a.shape, imap)

        # ---- 1) batched encode prologue (gsn_0 walkbacks + BCE cost) -------
        enc_args = [x_flat, mask, w0v, w0h, bh1_0, wout0, bout0]
        h0_flat, cost = pl.pallas_call(
            functools.partial(_encode_kernel, wb=wb0, M=M, PH=PH0, PV=PV0,
                              inv_norm=1.0 / float(B * self.in_size)),
            out_shape=(jax.ShapeDtypeStruct((M, PH0), jnp.float32),
                       jax.ShapeDtypeStruct((1, 1), jnp.float32)),
            grid_spec=pltpu.PrefetchScalarGridSpec(
                num_scalar_prefetch=0, grid=(1,),
                in_specs=[resident(a) for a in enc_args],
                out_specs=(pl.BlockSpec((M, PH0), lambda i: (0, 0)),
                           pl.BlockSpec((1, 1), lambda i: (0, 0)))),
            compiler_params=pltpu.CompilerParams(
                dimension_semantics=("arbitrary",)),
        )(*enc_args)

        # ---- 2) serial recurrent core over T steps --------------------------
        rec_args = [h0_flat.reshape(T, PB, PH0),
                    w1v, w1h, bh1_1, wout1, bout1,
                    wl0x, wl0h, bl0, wl1x, wl1h, bl1, wlin1, blin1]
        rec_in_specs = [pl.BlockSpec((1, PB, PH0), lambda t: (t, 0, 0))]
        rec_in_specs += [resident(a) for a in rec_args[1:]]
        l0h_seq = pl.pallas_call(
            functools.partial(_recurrent_kernel, wb1=wb1, rnn=self.rnn,
                              PB=PB, PH1=PH1, PV1=PV1),
            out_shape=jax.ShapeDtypeStruct((T, PB, PHr), jnp.float32),
            grid_spec=pltpu.PrefetchScalarGridSpec(
                num_scalar_prefetch=0, grid=(T,),
                in_specs=rec_in_specs,
                out_specs=pl.BlockSpec((1, PB, PHr), lambda t: (t, 0, 0)),
                scratch_shapes=[pltpu.VMEM((PB, PHr), jnp.float32)] * 4),
            compiler_params=pltpu.CompilerParams(
                dimension_semantics=("arbitrary",)),   # serial time recurrence
        )(*rec_args)

        # ---- 3) batched decode epilogue (linear_0 + gsn_0 decode) -----------
        dec_args = [l0h_seq.reshape(M, PHr), wlin0, blin0,
                    w0v, w0h, bh1_0, wout0, bout0]
        tgt = pl.pallas_call(
            functools.partial(_decode_kernel, wb=wb0, M=M, PH=PH0, PV=PV0),
            out_shape=jax.ShapeDtypeStruct((wb0, M, PV0), jnp.float32),
            grid_spec=pltpu.PrefetchScalarGridSpec(
                num_scalar_prefetch=0, grid=(1,),
                in_specs=[resident(a) for a in dec_args],
                out_specs=pl.BlockSpec((wb0, M, PV0), lambda i: (0, 0, 0))),
            compiler_params=pltpu.CompilerParams(
                dimension_semantics=("arbitrary",)),
        )(*dec_args)

        tgt = tgt.reshape(wb0, T, PB, PV0)[:, :, :B, :self.in_size]
        sequence_xs = [tgt[wb0 - 1, t] for t in range(T)]
        target_recons = [[tgt[w, t] for w in range(wb0)] for t in range(T)]
        return sequence_xs, cost[0, 0], target_recons


if __name__ == "__main__":
    key = jax.random.PRNGKey(0)
    k_x, k_p = jax.random.split(key)

    T, B = 3, 2
    in_size, hidden_size, rnn_hidden_size = 32, 32, 32

    # inputs in (0, 1) so the sigmoid/BCE visible criterion is well-defined
    xs = jax.nn.sigmoid(jax.random.normal(k_x, (T, B, in_size), jnp.float32))

    model = SEN(k_p, in_size=in_size, hidden_size=hidden_size,
                walkbacks=4, rnn_hidden_size=rnn_hidden_size)
    sequence_xs, encode_cost, target_recons = model.forward(xs)

    jax.block_until_ready(sequence_xs[-1])
    jax.block_until_ready(encode_cost)
    jax.block_until_ready(target_recons[-1][-1])

    assert sequence_xs[-1].shape == (B, in_size)
    assert target_recons[-1][-1].shape == (B, in_size)
    assert encode_cost.shape == ()
    assert bool(jnp.isfinite(encode_cost))
    print("KERNEL_OK")
</pallas_src>

<mosaic_0001>
module attributes {stable_mosaic.version = 11 : i64} {
  func.func @_encode_kernel(%arg0: i32, %arg1: memref<24x128xf32, #tpu.memory_space<vmem>>, %arg2: memref<24x128xf32, #tpu.memory_space<vmem>>, %arg3: memref<128x128xbf16, #tpu.memory_space<vmem>>, %arg4: memref<128x128xbf16, #tpu.memory_space<vmem>>, %arg5: memref<1x128xf32, #tpu.memory_space<vmem>>, %arg6: memref<128x256xbf16, #tpu.memory_space<vmem>>, %arg7: memref<1x256xf32, #tpu.memory_space<vmem>>, %arg8: memref<24x128xf32, #tpu.memory_space<vmem>>, %arg9: memref<1x1xf32, #tpu.memory_space<vmem>>) attributes {dimension_semantics = [#tpu.dimension_semantics<arbitrary>], iteration_bounds = array<i64: 1>, scalar_prefetch = 0 : i64, scratch_operands = 0 : i64, tpu.core_type = #tpu.core_type<tc>, window_params = [{pipeline_mode = #tpu.pipeline_mode<synchronous>, transform_indices = @transform_0, window_bounds = array<i64: 24, 128>}, {pipeline_mode = #tpu.pipeline_mode<synchronous>, transform_indices = @transform_1, window_bounds = array<i64: 24, 128>}, {pipeline_mode = #tpu.pipeline_mode<synchronous>, transform_indices = @transform_2, window_bounds = array<i64: 128, 128>}, {pipeline_mode = #tpu.pipeline_mode<synchronous>, transform_indices = @transform_3, window_bounds = array<i64: 128, 128>}, {pipeline_mode = #tpu.pipeline_mode<synchronous>, transform_indices = @transform_4, window_bounds = array<i64: 1, 128>}, {pipeline_mode = #tpu.pipeline_mode<synchronous>, transform_indices = @transform_5, window_bounds = array<i64: 128, 256>}, {pipeline_mode = #tpu.pipeline_mode<synchronous>, transform_indices = @transform_6, window_bounds = array<i64: 1, 256>}, {pipeline_mode = #tpu.pipeline_mode<synchronous>, transform_indices = @transform_7, window_bounds = array<i64: 24, 128>}, {pipeline_mode = #tpu.pipeline_mode<synchronous>, transform_indices = @transform_8, window_bounds = array<i64: 1, 1>}]} {
    %c0 = arith.constant 0 : index
    %c0_0 = arith.constant 0 : index
    %0 = vector.load %arg1[%c0, %c0_0] : memref<24x128xf32, #tpu.memory_space<vmem>>, vector<24x128xf32>
    %c0_1 = arith.constant 0 : index
    %c0_2 = arith.constant 0 : index
    %1 = vector.load %arg2[%c0_1, %c0_2] : memref<24x128xf32, #tpu.memory_space<vmem>>, vector<24x128xf32>
    %c0_3 = arith.constant 0 : index
    %c0_4 = arith.constant 0 : index
    %2 = vector.load %arg3[%c0_3, %c0_4] : memref<128x128xbf16, #tpu.memory_space<vmem>>, vector<128x128xbf16>
    %c0_5 = arith.constant 0 : index
    %c0_6 = arith.constant 0 : index
    %3 = vector.load %arg4[%c0_5, %c0_6] : memref<128x128xbf16, #tpu.memory_space<vmem>>, vector<128x128xbf16>
    %c0_7 = arith.constant 0 : index
    %c0_8 = arith.constant 0 : index
    %4 = vector.load %arg6[%c0_7, %c0_8] : memref<128x256xbf16, #tpu.memory_space<vmem>>, vector<128x256xbf16>
    %c0_9 = arith.constant 0 : index
    %c0_10 = arith.constant 0 : index
    %5 = vector.load %arg5[%c0_9, %c0_10] : memref<1x128xf32, #tpu.memory_space<vmem>>, vector<1x128xf32>
    %6 = vector.shape_cast %5 : vector<1x128xf32> to vector<1x128xf32>
    %7 = vector.broadcast %6 : vector<1x128xf32> to vector<24x128xf32>
    %c0_11 = arith.constant 0 : index
    %c0_12 = arith.constant 0 : index
    %8 = vector.load %arg7[%c0_11, %c0_12] : memref<1x256xf32, #tpu.memory_space<vmem>>, vector<1x256xf32>
    %9 = vector.shape_cast %8 : vector<1x256xf32> to vector<1x256xf32>
    %10 = vector.broadcast %9 : vector<1x256xf32> to vector<24x256xf32>
    %cst = arith.constant 0.000000e+00 : f32
    %11 = vector.broadcast %cst : f32 to vector<24x128xf32>
    %12 = arith.truncf %0 : vector<24x128xf32> to vector<24x128xbf16>
    %cst_13 = arith.constant dense<0.000000e+00> : vector<24x128xf32>
    %13 = tpu.matmul %12, %2, %cst_13 {dimension_numbers = #tpu.dot_dimension_numbers<[1], [0], [0], [1], [0, 0, 1, 1], [], []>} : vector<24x128xbf16>, vector<128x128xbf16>, vector<24x128xf32> -> vector<24x128xf32>
    %14 = arith.addf %13, %7 : vector<24x128xf32>
    %cst_14 = arith.constant 0.000000e+00 : f32
    %15 = vector.broadcast %cst_14 : f32 to vector<24x128xf32>
    %16 = arith.maximumf %14, %15 : vector<24x128xf32>
    %17 = arith.truncf %16 : vector<24x128xf32> to vector<24x128xbf16>
    %cst_15 = arith.constant dense<0.000000e+00> : vector<24x256xf32>
    %18 = tpu.matmul %17, %4, %cst_15 {dimension_numbers = #tpu.dot_dimension_numbers<[1], [0], [0], [1], [0, 0, 1, 1], [], []>} : vector<24x128xbf16>, vector<128x256xbf16>, vector<24x256xf32> -> vector<24x256xf32>
    %19 = arith.addf %18, %10 : vector<24x256xf32>
    %20 = vector.extract_strided_slice %19 {offsets = [0, 0], sizes = [24, 128], strides = [1, 1]} : vector<24x256xf32> to vector<24x128xf32>
    %cst_16 = arith.constant 0.000000e+00 : f32
    %21 = vector.broadcast %cst_16 : f32 to vector<24x128xf32>
    %22 = arith.maximumf %20, %21 : vector<24x128xf32>
    %23 = vector.extract_strided_slice %19 {offsets = [0, 128], sizes = [24, 128], strides = [1, 1]} : vector<24x256xf32> to vector<24x128xf32>
    %24 = arith.negf %23 : vector<24x128xf32>
    %25 = math.exp %24 : vector<24x128xf32>
    %cst_17 = arith.constant 1.000000e+00 : f32
    %26 = vector.broadcast %cst_17 : f32 to vector<24x128xf32>
    %27 = arith.addf %26, %25 : vector<24x128xf32>
    %28 = arith.divf %26, %27 : vector<24x128xf32>
    %29 = math.log %28 : vector<24x128xf32>
    %cst_18 = arith.constant -1.000000e+02 : f32
    %30 = vector.broadcast %cst_18 : f32 to vector<24x128xf32>
    %31 = arith.maximumf %29, %30 : vector<24x128xf32>
    %cst_19 = arith.constant 1.000000e+00 : f32
    %32 = vector.broadcast %cst_19 : f32 to vector<24x128xf32>
    %33 = arith.subf %32, %28 : vector<24x128xf32>
    %34 = math.log %33 : vector<24x128xf32>
    %cst_20 = arith.constant -1.000000e+02 : f32
    %35 = vector.broadcast %cst_20 : f32 to vector<24x128xf32>
    %36 = arith.maximumf %34, %35 : vector<24x128xf32>
    %37 = arith.mulf %0, %31 : vector<24x128xf32>
    %cst_21 = arith.constant 1.000000e+00 : f32
    %38 = vector.broadcast %cst_21 : f32 to vector<24x128xf32>
    %39 = arith.subf %38, %0 : vector<24x128xf32>
    %40 = arith.mulf %39, %36 : vector<24x128xf32>
    %41 = arith.addf %37, %40 : vector<24x128xf32>
    %42 = arith.subf %11, %41 : vector<24x128xf32>
    %43 = arith.truncf %28 : vector<24x128xf32> to vector<24x128xbf16>
    %cst_22 = arith.constant dense<0.000000e+00> : vector<24x128xf32>
    %44 = tpu.matmul %43, %2, %cst_22 {dimension_numbers = #tpu.dot_dimension_numbers<[1], [0], [0], [1], [0, 0, 1, 1], [], []>} : vector<24x128xbf16>, vector<128x128xbf16>, vector<24x128xf32> -> vector<24x128xf32>
    %45 = arith.addf %44, %7 : vector<24x128xf32>
    %46 = arith.truncf %22 : vector<24x128xf32> to vector<24x128xbf16>
    %cst_23 = arith.constant dense<0.000000e+00> : vector<24x128xf32>
    %47 = tpu.matmul %46, %3, %cst_23 {dimension_numbers = #tpu.dot_dimension_numbers<[1], [0], [0], [1], [0, 0, 1, 1], [], []>} : vector<24x128xbf16>, vector<128x128xbf16>, vector<24x128xf32> -> vector<24x128xf32>
    %48 = arith.addf %45, %47 : vector<24x128xf32>
    %cst_24 = arith.constant 0.000000e+00 : f32
    %49 = vector.broadcast %cst_24 : f32 to vector<24x128xf32>
    %50 = arith.maximumf %48, %49 : vector<24x128xf32>
    %51 = arith.truncf %50 : vector<24x128xf32> to vector<24x128xbf16>
    %cst_25 = arith.constant dense<0.000000e+00> : vector<24x256xf32>
    %52 = tpu.matmul %51, %4, %cst_25 {dimension_numbers = #tpu.dot_dimension_numbers<[1], [0], [0], [1], [0, 0, 1, 1], [], []>} : vector<24x128xbf16>, vector<128x256xbf16>, vector<24x256xf32> -> vector<24x256xf32>
    %53 = arith.addf %52, %10 : vector<24x256xf32>
    %54 = vector.extract_strided_slice %53 {offsets = [0, 0], sizes = [24, 128], strides = [1, 1]} : vector<24x256xf32> to vector<24x128xf32>
    %cst_26 = arith.constant 0.000000e+00 : f32
    %55 = vector.broadcast %cst_26 : f32 to vector<24x128xf32>
    %56 = arith.maximumf %54, %55 : vector<24x128xf32>
    %57 = vector.extract_strided_slice %53 {offsets = [0, 128], sizes = [24, 128], strides = [1, 1]} : vector<24x256xf32> to vector<24x128xf32>
    %58 = arith.negf %57 : vector<24x128xf32>
    %59 = math.exp %58 : vector<24x128xf32>
    %cst_27 = arith.constant 1.000000e+00 : f32
    %60 = vector.broadcast %cst_27 : f32 to vector<24x128xf32>
    %61 = arith.addf %60, %59 : vector<24x128xf32>
    %62 = arith.divf %60, %61 : vector<24x128xf32>
    %63 = math.log %62 : vector<24x128xf32>
    %cst_28 = arith.constant -1.000000e+02 : f32
    %64 = vector.broadcast %cst_28 : f32 to vector<24x128xf32>
    %65 = arith.maximumf %63, %64 : vector<24x128xf32>
    %cst_29 = arith.constant 1.000000e+00 : f32
    %66 = vector.broadcast %cst_29 : f32 to vector<24x128xf32>
    %67 = arith.subf %66, %62 : vector<24x128xf32>
    %68 = math.log %67 : vector<24x128xf32>
    %cst_30 = arith.constant -1.000000e+02 : f32
    %69 = vector.broadcast %cst_30 : f32 to vector<24x128xf32>
    %70 = arith.maximumf %68, %69 : vector<24x128xf32>
    %71 = arith.mulf %0, %65 : vector<24x128xf32>
    %cst_31 = arith.constant 1.000000e+00 : f32
    %72 = vector.broadcast %cst_31 : f32 to vector<24x128xf32>
    %73 = arith.subf %72, %0 : vector<24x128xf32>
    %74 = arith.mulf %73, %70 : vector<24x128xf32>
    %75 = arith.addf %71, %74 : vector<24x128xf32>
    %76 = arith.subf %42, %75 : vector<24x128xf32>
    %77 = arith.truncf %62 : vector<24x128xf32> to vector<24x128xbf16>
    %cst_32 = arith.constant dense<0.000000e+00> : vector<24x128xf32>
    %78 = tpu.matmul %77, %2, %cst_32 {dimension_numbers = #tpu.dot_dimension_numbers<[1], [0], [0], [1], [0, 0, 1, 1], [], []>} : vector<24x128xbf16>, vector<128x128xbf16>, vector<24x128xf32> -> vector<24x128xf32>
    %79 = arith.addf %78, %7 : vector<24x128xf32>
    %80 = arith.truncf %56 : vector<24x128xf32> to vector<24x128xbf16>
    %cst_33 = arith.constant dense<0.000000e+00> : vector<24x128xf32>
    %81 = tpu.matmul %80, %3, %cst_33 {dimension_numbers = #tpu.dot_dimension_numbers<[1], [0], [0], [1], [0, 0, 1, 1], [], []>} : vector<24x128xbf16>, vector<128x128xbf16>, vector<24x128xf32> -> vector<24x128xf32>
    %82 = arith.addf %79, %81 : vector<24x128xf32>
    %cst_34 = arith.constant 0.000000e+00 : f32
    %83 = vector.broadcast %cst_34 : f32 to vector<24x128xf32>
    %84 = arith.maximumf %82, %83 : vector<24x128xf32>
    %85 = arith.truncf %84 : vector<24x128xf32> to vector<24x128xbf16>
    %cst_35 = arith.constant dense<0.000000e+00> : vector<24x256xf32>
    %86 = tpu.matmul %85, %4, %cst_35 {dimension_numbers = #tpu.dot_dimension_numbers<[1], [0], [0], [1], [0, 0, 1, 1], [], []>} : vector<24x128xbf16>, vector<128x256xbf16>, vector<24x256xf32> -> vector<24x256xf32>
    %87 = arith.addf %86, %10 : vector<24x256xf32>
    %88 = vector.extract_strided_slice %87 {offsets = [0, 0], sizes = [24, 128], strides = [1, 1]} : vector<24x256xf32> to vector<24x128xf32>
    %cst_36 = arith.constant 0.000000e+00 : f32
    %89 = vector.broadcast %cst_36 : f32 to vector<24x128xf32>
    %90 = arith.maximumf %88, %89 : vector<24x128xf32>
    %91 = vector.extract_strided_slice %87 {offsets = [0, 128], sizes = [24, 128], strides = [1, 1]} : vector<24x256xf32> to vector<24x128xf32>
    %92 = arith.negf %91 : vector<24x128xf32>
    %93 = math.exp %92 : vector<24x128xf32>
    %cst_37 = arith.constant 1.000000e+00 : f32
    %94 = vector.broadcast %cst_37 : f32 to vector<24x128xf32>
    %95 = arith.addf %94, %93 : vector<24x128xf32>
    %96 = arith.divf %94, %95 : vector<24x128xf32>
    %97 = math.log %96 : vector<24x128xf32>
    %cst_38 = arith.constant -1.000000e+02 : f32
    %98 = vector.broadcast %cst_38 : f32 to vector<24x128xf32>
    %99 = arith.maximumf %97, %98 : vector<24x128xf32>
    %cst_39 = arith.constant 1.000000e+00 : f32
    %100 = vector.broadcast %cst_39 : f32 to vector<24x128xf32>
    %101 = arith.subf %100, %96 : vector<24x128xf32>
    %102 = math.log %101 : vector<24x128xf32>
    %cst_40 = arith.constant -1.000000e+02 : f32
    %103 = vector.broadcast %cst_40 : f32 to vector<24x128xf32>
    %104 = arith.maximumf %102, %103 : vector<24x128xf32>
    %105 = arith.mulf %0, %99 : vector<24x128xf32>
    %cst_41 = arith.constant 1.000000e+00 : f32
    %106 = vector.broadcast %cst_41 : f32 to vector<24x128xf32>
    %107 = arith.subf %106, %0 : vector<24x128xf32>
    %108 = arith.mulf %107, %104 : vector<24x128xf32>
    %109 = arith.addf %105, %108 : vector<24x128xf32>
    %110 = arith.subf %76, %109 : vector<24x128xf32>
    %111 = arith.truncf %96 : vector<24x128xf32> to vector<24x128xbf16>
    %cst_42 = arith.constant dense<0.000000e+00> : vector<24x128xf32>
    %112 = tpu.matmul %111, %2, %cst_42 {dimension_numbers = #tpu.dot_dimension_numbers<[1], [0], [0], [1], [0, 0, 1, 1], [], []>} : vector<24x128xbf16>, vector<128x128xbf16>, vector<24x128xf32> -> vector<24x128xf32>
    %113 = arith.addf %112, %7 : vector<24x128xf32>
    %114 = arith.truncf %90 : vector<24x128xf32> to vector<24x128xbf16>
    %cst_43 = arith.constant dense<0.000000e+00> : vector<24x128xf32>
    %115 = tpu.matmul %114, %3, %cst_43 {dimension_numbers = #tpu.dot_dimension_numbers<[1], [0], [0], [1], [0, 0, 1, 1], [], []>} : vector<24x128xbf16>, vector<128x128xbf16>, vector<24x128xf32> -> vector<24x128xf32>
    %116 = arith.addf %113, %115 : vector<24x128xf32>
    %cst_44 = arith.constant 0.000000e+00 : f32
    %117 = vector.broadcast %cst_44 : f32 to vector<24x128xf32>
    %118 = arith.maximumf %116, %117 : vector<24x128xf32>
    %119 = arith.truncf %118 : vector<24x128xf32> to vector<24x128xbf16>
    %cst_45 = arith.constant dense<0.000000e+00> : vector<24x256xf32>
    %120 = tpu.matmul %119, %4, %cst_45 {dimension_numbers = #tpu.dot_dimension_numbers<[1], [0], [0], [1], [0, 0, 1, 1], [], []>} : vector<24x128xbf16>, vector<128x256xbf16>, vector<24x256xf32> -> vector<24x256xf32>
    %121 = arith.addf %120, %10 : vector<24x256xf32>
    %122 = vector.extract_strided_slice %121 {offsets = [0, 128], sizes = [24, 128], strides = [1, 1]} : vector<24x256xf32> to vector<24x128xf32>
    %123 = arith.negf %122 : vector<24x128xf32>
    %124 = math.exp %123 : vector<24x128xf32>
    %cst_46 = arith.constant 1.000000e+00 : f32
    %125 = vector.broadcast %cst_46 : f32 to vector<24x128xf32>
    %126 = arith.addf %125, %124 : vector<24x128xf32>
    %127 = arith.divf %125, %126 : vector<24x128xf32>
    %128 = math.log %127 : vector<24x128xf32>
    %cst_47 = arith.constant -1.000000e+02 : f32
    %129 = vector.broadcast %cst_47 : f32 to vector<24x128xf32>
    %130 = arith.maximumf %128, %129 : vector<24x128xf32>
    %cst_48 = arith.constant 1.000000e+00 : f32
    %131 = vector.broadcast %cst_48 : f32 to vector<24x128xf32>
    %132 = arith.subf %131, %127 : vector<24x128xf32>
    %133 = math.log %132 : vector<24x128xf32>
    %cst_49 = arith.constant -1.000000e+02 : f32
    %134 = vector.broadcast %cst_49 : f32 to vector<24x128xf32>
    %135 = arith.maximumf %133, %134 : vector<24x128xf32>
    %136 = arith.mulf %0, %130 : vector<24x128xf32>
    %cst_50 = arith.constant 1.000000e+00 : f32
    %137 = vector.broadcast %cst_50 : f32 to vector<24x128xf32>
    %138 = arith.subf %137, %0 : vector<24x128xf32>
    %139 = arith.mulf %138, %135 : vector<24x128xf32>
    %140 = arith.addf %136, %139 : vector<24x128xf32>
    %141 = arith.subf %110, %140 : vector<24x128xf32>
    %142 = arith.mulf %141, %1 : vector<24x128xf32>
    %cst_51 = arith.constant dense<0.000000e+00> : vector<24xf32>
    %143 = vector.multi_reduction <add>, %142, %cst_51 [1] : vector<24x128xf32> to vector<24xf32>
    %144 = vector.shape_cast %143 : vector<24xf32> to vector<24x1xf32>
    %cst_52 = arith.constant dense<0.000000e+00> : vector<1xf32>
    %145 = vector.multi_reduction <add>, %144, %cst_52 [0] : vector<24x1xf32> to vector<1xf32>
    %146 = vector.shape_cast %145 : vector<1xf32> to vector<1x1xf32>
    %cst_53 = arith.constant 1.562500e-02 : f32
    %147 = vector.broadcast %cst_53 : f32 to vector<1x1xf32>
    %148 = arith.mulf %146, %147 : vector<1x1xf32>
    %c0_54 = arith.constant 0 : index
    %c0_55 = arith.constant 0 : index
    %149 = vector.load %arg9[%c0_54, %c0_55] : memref<1x1xf32, #tpu.memory_space<vmem>>, vector<1x1xf32>
    tpu.vector_store %arg9[%c0_54, %c0_55], %148 {strides = array<i32>} : memref<1x1xf32, #tpu.memory_space<vmem>>, vector<1x1xf32>,
    %c0_56 = arith.constant 0 : index
    %c0_57 = arith.constant 0 : index
    %150 = vector.load %arg8[%c0_56, %c0_57] : memref<24x128xf32, #tpu.memory_space<vmem>>, vector<24x128xf32>
    tpu.vector_store %arg8[%c0_56, %c0_57], %118 {strides = array<i32>} : memref<24x128xf32, #tpu.memory_space<vmem>>, vector<24x128xf32>,
    return
  }
  func.func @transform_0(%arg0: i32) -> (i32, i32) {
    %c0_i32 = arith.constant 0 : i32
    %c0_i32_0 = arith.constant 0 : i32
    %c0_i32_1 = arith.constant 0 : i32
    return %c0_i32, %c0_i32_0 : i32, i32
  }
  func.func @transform_1(%arg0: i32) -> (i32, i32) {
    %c0_i32 = arith.constant 0 : i32
    %c0_i32_0 = arith.constant 0 : i32
    %c0_i32_1 = arith.constant 0 : i32
    return %c0_i32, %c0_i32_0 : i32, i32
  }
  func.func @transform_2(%arg0: i32) -> (i32, i32) {
    %c0_i32 = arith.constant 0 : i32
    %c0_i32_0 = arith.constant 0 : i32
    %c0_i32_1 = arith.constant 0 : i32
    return %c0_i32, %c0_i32_0 : i32, i32
  }
  func.func @transform_3(%arg0: i32) -> (i32, i32) {
    %c0_i32 = arith.constant 0 : i32
    %c0_i32_0 = arith.constant 0 : i32
    %c0_i32_1 = arith.constant 0 : i32
    return %c0_i32, %c0_i32_0 : i32, i32
  }
  func.func @transform_4(%arg0: i32) -> (i32, i32) {
    %c0_i32 = arith.constant 0 : i32
    %c0_i32_0 = arith.constant 0 : i32
    %c0_i32_1 = arith.constant 0 : i32
    return %c0_i32, %c0_i32_0 : i32, i32
  }
  func.func @transform_5(%arg0: i32) -> (i32, i32) {
    %c0_i32 = arith.constant 0 : i32
    %c0_i32_0 = arith.constant 0 : i32
    %c0_i32_1 = arith.constant 0 : i32
    return %c0_i32, %c0_i32_0 : i32, i32
  }
  func.func @transform_6(%arg0: i32) -> (i32, i32) {
    %c0_i32 = arith.constant 0 : i32
    %c0_i32_0 = arith.constant 0 : i32
    %c0_i32_1 = arith.constant 0 : i32
    return %c0_i32, %c0_i32_0 : i32, i32
  }
  func.func @transform_7(%arg0: i32) -> (i32, i32) {
    %c0_i32 = arith.constant 0 : i32
    %c0_i32_0 = arith.constant 0 : i32
    %c0_i32_1 = arith.constant 0 : i32
    return %c0_i32, %c0_i32_0 : i32, i32
  }
  func.func @transform_8(%arg0: i32) -> (i32, i32) {
    %c0_i32 = arith.constant 0 : i32
    %c0_i32_0 = arith.constant 0 : i32
    %c0_i32_1 = arith.constant 0 : i32
    return %c0_i32, %c0_i32_0 : i32, i32
  }
}

</mosaic_0001>

<llo_original>
// kernel: tpu_custom_call.1
$region0: #{tpu_custom_call.1}
  #allocation0 [shape = 'u32[]', space=smem, size = 0x4, offset = 0x4, fixed_abs, tag = 'smem constant byte address 0x4 - core index']
  #allocation1 [shape = 'u32[144,128]{1,0:T(1,128)}', space=vmem, size = 0x12000, scoped, tag = 'internal scratch']
  %s0 = inlined_call_operand.hbm [shape: f32[24,128], index: 0, kind: input, shape index: {}]
  %s1 = inlined_call_operand.hbm [shape: f32[24,128], index: 1, kind: input, shape index: {}]
  %s2 = inlined_call_operand.hbm [shape: bf16[128,128], index: 2, kind: input, shape index: {}]
  %s3 = inlined_call_operand.hbm [shape: bf16[128,128], index: 3, kind: input, shape index: {}]
  %s4 = inlined_call_operand.vmem [shape: f32[1,128], index: 4, kind: input, shape index: {}]
  %s5 = inlined_call_operand.hbm [shape: bf16[128,256], index: 5, kind: input, shape index: {}]
  %s6 = inlined_call_operand.vmem [shape: f32[1,256], index: 6, kind: input, shape index: {}]
  %s7 = inlined_call_operand.hbm [shape: f32[24,128], index: 7, kind: output, shape index: {0}]
  %s8 = inlined_call_operand.hbm [shape: f32[1,1], index: 8, kind: output, shape index: {1}]
  %9 = xla_tuple %s7, %s8
  %s10 = sld [smem:[#allocation0]]
  $region66: #{tpu_custom_call.1} parent=0
    _
  %s12 = ssub.s32 1, %s10
  %s13 = scalar_select 0, %s12, %s10
  $region1: #{tpu_custom_call.1} parent=0
    #allocation2 [shape = 'u8[12288]{0}', space=vmem, size = 0x3000, scoped, tag = 'input window, operand 0, single buffered']
    #allocation3 [shape = 's32[1]{0}', space=sflag, size = 0x4, scoped, tag = 'scoped memory for tpu_custom_call.1']
    #allocation4 [shape = 's32[1]{0}', space=sflag, size = 0x4, scoped, tag = 'scoped memory for tpu_custom_call.1']
    #allocation5 [shape = 'u8[12288]{0}', space=vmem, size = 0x3000, scoped, tag = 'input window, operand 1, single buffered']
    #allocation6 [shape = 's32[1]{0}', space=sflag, size = 0x4, scoped, tag = 'scoped memory for tpu_custom_call.1']
    #allocation7 [shape = 'u8[32768]{0}', space=vmem, size = 0x8000, scoped, tag = 'input window, operand 2, single buffered']
    #allocation8 [shape = 'u8[32768]{0}', space=vmem, size = 0x8000, scoped, tag = 'input window, operand 3, single buffered']
    #allocation9 [shape = 's32[1]{0}', space=sflag, size = 0x4, scoped, tag = 'scoped memory for tpu_custom_call.1']
    #allocation10 [shape = 'u8[65536]{0}', space=vmem, size = 0x10000, scoped, tag = 'input window, operand 5, single buffered']
    #allocation11 [shape = 'u8[12288]{0}', space=vmem, size = 0x3000, scoped, tag = 'output window, operand 0, single buffered']
    #allocation12 [shape = 'u8[512]{0}', space=vmem, size = 0x400, scoped, tag = 'output window, operand 1, single buffered']
    #allocation13 [shape = 's32[1]{0}', space=sflag, size = 0x4, scoped, tag = 'scoped memory for tpu_custom_call.1']
    %14 = vsyncpa [#allocation3], 0
    %15 = vsyncpa [#allocation6], 0
    %16 = vsyncpa [#allocation9], 0
    %17 = vsyncpa [#allocation4], 0
    %18 = vsyncpa [#allocation13], 0
    // Predicated region
    $region2: #{tpu_custom_call.1} parent=1 // pred_check
      _
    $region3: #{tpu_custom_call.1} parent=1 // pred_check_branch
      %20 = sbr.rel (0) target = $region5
    $region4: #{tpu_custom_call.1} parent=1 // pred_region
      %s22 = ssub.s32 384, 384
      %23 = vsyncadd [#allocation3], %s22
      %s24 = sshll.u32 [#allocation2], 4
      %s25 = int_to_ptr.vmem [resolvable:$true] %s24
      %30 = dma.hbm_to_vmem [thread:$0]  %s0, 384, %s25, [#allocation3], 128, 128, 8
    $region5: #{tpu_custom_call.1} parent=1 // pred_fallthru
      _
    // Predicated region
    $region6: #{tpu_custom_call.1} parent=1 // pred_check
      _
    $region7: #{tpu_custom_call.1} parent=1 // pred_check_branch
      %32 = sbr.rel (0) target = $region9
    $region8: #{tpu_custom_call.1} parent=1 // pred_region
      %s34 = ssub.s32 384, 384
      %35 = vsyncadd [#allocation6], %s34
      %s36 = sshll.u32 [#allocation5], 4
      %s37 = int_to_ptr.vmem [resolvable:$true] %s36
      %42 = dma.hbm_to_vmem [thread:$0]  %s1, 384, %s37, [#allocation6], 128, 128, 8
    $region9: #{tpu_custom_call.1} parent=1 // pred_fallthru
      _
    // Predicated region
    $region10: #{tpu_custom_call.1} parent=1 // pred_check
      _
    $region11: #{tpu_custom_call.1} parent=1 // pred_check_branch
      %44 = sbr.rel (0) target = $region13
    $region12: #{tpu_custom_call.1} parent=1 // pred_region
      %s46 = ssub.s32 1024, 1024
      %47 = vsyncadd [#allocation6], %s46
      %s48 = sshll.u32 [#allocation7], 4
      %s49 = int_to_ptr.vmem [resolvable:$true] %s48
      %54 = dma.hbm_to_vmem [thread:$0]  %s2, 1024, %s49, [#allocation6], 64, 64, 4
    $region13: #{tpu_custom_call.1} parent=1 // pred_fallthru
      _
    // Predicated region
    $region14: #{tpu_custom_call.1} parent=1 // pred_check
      _
    $region15: #{tpu_custom_call.1} parent=1 // pred_check_branch
      %56 = sbr.rel (0) target = $region17
    $region16: #{tpu_custom_call.1} parent=1 // pred_region
      %s58 = ssub.s32 1024, 1024
      %59 = vsyncadd [#allocation9], %s58
      %s60 = sshll.u32 [#allocation8], 4
      %s61 = int_to_ptr.vmem [resolvable:$true] %s60
      %66 = dma.hbm_to_vmem [thread:$0]  %s3, 1024, %s61, [#allocation9], 64, 64, 4
    $region17: #{tpu_custom_call.1} parent=1 // pred_fallthru
      _
    // Predicated region
    $region18: #{tpu_custom_call.1} parent=1 // pred_check
      _
    $region19: #{tpu_custom_call.1} parent=1 // pred_check_branch
      %68 = sbr.rel (0) target = $region21
    $region20: #{tpu_custom_call.1} parent=1 // pred_region
      _
    $region21: #{tpu_custom_call.1} parent=1 // pred_fallthru
      _
    // Predicated region
    $region22: #{tpu_custom_call.1} parent=1 // pred_check
      _
    $region23: #{tpu_custom_call.1} parent=1 // pred_check_branch
      %70 = sbr.rel (0) target = $region25
    $region24: #{tpu_custom_call.1} parent=1 // pred_region
      %s72 = ssub.s32 2048, 2048
      %73 = vsyncadd [#allocation9], %s72
      %s74 = sshll.u32 [#allocation10], 4
      %s75 = int_to_ptr.vmem [resolvable:$true] %s74
      %80 = dma.hbm_to_vmem [thread:$0]  %s5, 2048, %s75, [#allocation9], 128, 128, 8
    $region25: #{tpu_custom_call.1} parent=1 // pred_fallthru
      _
    // Predicated region
    $region26: #{tpu_custom_call.1} parent=1 // pred_check
      _
    $region27: #{tpu_custom_call.1} parent=1 // pred_check_branch
      %82 = sbr.rel (0) target = $region29
    $region28: #{tpu_custom_call.1} parent=1 // pred_region
      _
    $region29: #{tpu_custom_call.1} parent=1 // pred_fallthru
      _
    // Predicated region
    $region30: #{tpu_custom_call.1} parent=1 // pred_check
      _
    $region31: #{tpu_custom_call.1} parent=1 // pred_check_branch
      %84 = sbr.rel (0) target = $region33
    $region32: #{tpu_custom_call.1} parent=1 // pred_region
      %85 = dma.done [#allocation3], 384
    $region33: #{tpu_custom_call.1} parent=1 // pred_fallthru
      _
    // Predicated region
    $region34: #{tpu_custom_call.1} parent=1 // pred_check
      _
    $region35: #{tpu_custom_call.1} parent=1 // pred_check_branch
      %87 = sbr.rel (0) target = $region37
    $region36: #{tpu_custom_call.1} parent=1 // pred_region
      %88 = dma.done [#allocation6], 384
    $region37: #{tpu_custom_call.1} parent=1 // pred_fallthru
      _
    // Predicated region
    $region38: #{tpu_custom_call.1} parent=1 // pred_check
      _
    $region39: #{tpu_custom_call.1} parent=1 // pred_check_branch
      %90 = sbr.rel (0) target = $region41
    $region40: #{tpu_custom_call.1} parent=1 // pred_region
      %91 = dma.done [#allocation6], 1024
    $region41: #{tpu_custom_call.1} parent=1 // pred_fallthru
      _
    // Predicated region
    $region42: #{tpu_custom_call.1} parent=1 // pred_check
      _
    $region43: #{tpu_custom_call.1} parent=1 // pred_check_branch
      %93 = sbr.rel (0) target = $region45
    $region44: #{tpu_custom_call.1} parent=1 // pred_region
      %94 = dma.done [#allocation9], 1024
    $region45: #{tpu_custom_call.1} parent=1 // pred_fallthru
      _
    // Predicated region
    $region46: #{tpu_custom_call.1} parent=1 // pred_check
      _
    $region47: #{tpu_custom_call.1} parent=1 // pred_check_branch
      %96 = sbr.rel (0) target = $region49
    $region48: #{tpu_custom_call.1} parent=1 // pred_region
      %97 = dma.done [#allocation9], 2048
    $region49: #{tpu_custom_call.1} parent=1 // pred_fallthru
      _
    %v99 = vld [vmem:[#allocation2] sm:$0xff]
    %v100 = vld [vmem:[#allocation2 + $0x8] sm:$0xff]
    %v101 = vld [vmem:[#allocation2 + $0x10] sm:$0xff]
    %v102 = vld [vmem:[#allocation5] sm:$0xff]
    %v103 = vld [vmem:[#allocation5 + $0x8] sm:$0xff]
    %v104 = vld [vmem:[#allocation5 + $0x10] sm:$0xff]
    %v105 = vld [vmem:[#allocation7] sm:$0xf]
    %v106 = vld [vmem:[#allocation7 + $0x4] sm:$0xf]
    %v107 = vld [vmem:[#allocation7 + $0x8] sm:$0xf]
    %v108 = vld [vmem:[#allocation7 + $0xc] sm:$0xf]
    %v109 = vld [vmem:[#allocation7 + $0x10] sm:$0xf]
    %v110 = vld [vmem:[#allocation7 + $0x14] sm:$0xf]
    %v111 = vld [vmem:[#allocation7 + $0x18] sm:$0xf]
    %v112 = vld [vmem:[#allocation7 + $0x1c] sm:$0xf]
    %v113 = vld [vmem:[#allocation7 + $0x20] sm:$0xf]
    %v114 = vld [vmem:[#allocation7 + $0x24] sm:$0xf]
    %v115 = vld [vmem:[#allocation7 + $0x28] sm:$0xf]
    %v116 = vld [vmem:[#allocation7 + $0x2c] sm:$0xf]
    %v117 = vld [vmem:[#allocation7 + $0x30] sm:$0xf]
    %v118 = vld [vmem:[#allocation7 + $0x34] sm:$0xf]
    %v119 = vld [vmem:[#allocation7 + $0x38] sm:$0xf]
    %v120 = vld [vmem:[#allocation7 + $0x3c] sm:$0xf]
    %v121 = vld [vmem:[#allocation8] sm:$0xf]
    %v122 = vld [vmem:[#allocation8 + $0x4] sm:$0xf]
    %v123 = vld [vmem:[#allocation8 + $0x8] sm:$0xf]
    %v124 = vld [vmem:[#allocation8 + $0xc] sm:$0xf]
    %v125 = vld [vmem:[#allocation8 + $0x10] sm:$0xf]
    %v126 = vld [vmem:[#allocation8 + $0x14] sm:$0xf]
    %v127 = vld [vmem:[#allocation8 + $0x18] sm:$0xf]
    %v128 = vld [vmem:[#allocation8 + $0x1c] sm:$0xf]
    %v129 = vld [vmem:[#allocation8 + $0x20] sm:$0xf]
    %v130 = vld [vmem:[#allocation8 + $0x24] sm:$0xf]
    %v131 = vld [vmem:[#allocation8 + $0x28] sm:$0xf]
    %v132 = vld [vmem:[#allocation8 + $0x2c] sm:$0xf]
    %v133 = vld [vmem:[#allocation8 + $0x30] sm:$0xf]
    %v134 = vld [vmem:[#allocation8 + $0x34] sm:$0xf]
    %v135 = vld [vmem:[#allocation8 + $0x38] sm:$0xf]
    %v136 = vld [vmem:[#allocation8 + $0x3c] sm:$0xf]
    %v137 = vld [vmem:[#allocation10] sm:$0xff]
    %v138 = vld [vmem:[#allocation10 + $0x8] sm:$0xff]
    %v139 = vld [vmem:[#allocation10 + $0x10] sm:$0xff]
    %v140 = vld [vmem:[#allocation10 + $0x18] sm:$0xff]
    %v141 = vld [vmem:[#allocation10 + $0x20] sm:$0xff]
    %v142 = vld [vmem:[#allocation10 + $0x28] sm:$0xff]
    %v143 = vld [vmem:[#allocation10 + $0x30] sm:$0xff]
    %v144 = vld [vmem:[#allocation10 + $0x38] sm:$0xff]
    %v145 = vld [vmem:[#allocation10 + $0x40] sm:$0xff]
    %v146 = vld [vmem:[#allocation10 + $0x48] sm:$0xff]
    %v147 = vld [vmem:[#allocation10 + $0x50] sm:$0xff]
    %v148 = vld [vmem:[#allocation10 + $0x58] sm:$0xff]
    %v149 = vld [vmem:[#allocation10 + $0x60] sm:$0xff]
    %v150 = vld [vmem:[#allocation10 + $0x68] sm:$0xff]
    %v151 = vld [vmem:[#allocation10 + $0x70] sm:$0xff]
    %v152 = vld [vmem:[#allocation10 + $0x78] sm:$0xff]
    %v153 = vld [vmem:[%s4] sm:$0x1]
    %v155 = vlaneseq
    %v156 = vshrl.u32 %v155, 7
    %v157 = vsub.s32 0, %v156
    %v158 = vrot.slane %v153, %v157
    %v160 = vld [vmem:[%s6] sm:$0x3]
    %v162 = vlaneseq
    %v163 = vshrl.u32 %v162, 7
    %v164 = vsub.s32 0, %v163
    %v165 = vrot.slane %v160, %v164
    %v166 = vlaneseq
    %v167 = vshrl.u32 %v166, 7
    %v168 = vsub.s32 1, %v167
    %v169 = vrot.slane %v160, %v168
    %v172 = vpack.c.bf16 %v100, %v99
    %v173 = vpack.c.bf16 %v101, %v101
    %v190 = vunpack.c.l.b16 %v105
    %v191 = vunpack.c.l.b16 %v106
    %v192 = vunpack.c.l.b16 %v107
    %v193 = vunpack.c.l.b16 %v108
    %v194 = vunpack.c.l.b16 %v109
    %v195 = vunpack.c.l.b16 %v110
    %v196 = vunpack.c.l.b16 %v111
    %v197 = vunpack.c.l.b16 %v112
    %v198 = vunpack.c.l.b16 %v113
    %v199 = vunpack.c.l.b16 %v114
    %v200 = vunpack.c.l.b16 %v115
    %v201 = vunpack.c.l.b16 %v116
    %v202 = vunpack.c.l.b16 %v117
    %v203 = vunpack.c.l.b16 %v118
    %v204 = vunpack.c.l.b16 %v119
    %v205 = vunpack.c.l.b16 %v120
    %v206 = vpack.c.b16 %v191, %v190
    %v207 = vpack.c.b16 %v193, %v192
    %v208 = vpack.c.b16 %v195, %v194
    %v209 = vpack.c.b16 %v197, %v196
    %v210 = vpack.c.b16 %v199, %v198
    %v211 = vpack.c.b16 %v201, %v200
    %v212 = vpack.c.b16 %v203, %v202
    %v213 = vpack.c.b16 %v205, %v204
    %222 = vmatprep.subr.bf16.mxu0 0
    %223 = vmatpush1.bf16.msra.mxu0 %v206
    %224 = vmatprep.subr.bf16.mxu0 0
    %225 = vmatpush1.bf16.msra.mxu0 %v207
    %226 = vmatprep.subr.bf16.mxu0 0
    %227 = vmatpush1.bf16.msra.mxu0 %v208
    %228 = vmatprep.subr.bf16.mxu0 0
    %229 = vmatpush1.bf16.msra.mxu0 %v209
    %230 = vmatprep.subr.bf16.mxu0 0
    %231 = vmatpush1.bf16.msra.mxu0 %v210
    %232 = vmatprep.subr.bf16.mxu0 0
    %233 = vmatpush1.bf16.msra.mxu0 %v211
    %234 = vmatprep.subr.bf16.mxu0 0
    %235 = vmatpush1.bf16.msra.mxu0 %v212
    %236 = vmatprep.subr.bf16.mxu0 0
    %237 = vmatpush1.bf16.msra.mxu0 %v213
    %238 = vmatprep.subr.bf16.mxu0 0
    %239 = vmatpush1.bf16.msra.mxu0 0
    %240 = vmatprep.subr.bf16.mxu0 0
    %241 = vmatpush1.bf16.msra.mxu0 0
    %242 = vmatprep.subr.bf16.mxu0 0
    %243 = vmatpush1.bf16.msra.mxu0 0
    %244 = vmatprep.subr.bf16.mxu0 0
    %245 = vmatpush1.bf16.msra.mxu0 0
    %246 = vmatprep.subr.bf16.mxu0 0
    %247 = vmatpush1.bf16.msra.mxu0 0
    %248 = vmatprep.subr.bf16.mxu0 0
    %249 = vmatpush1.bf16.msra.mxu0 0
    %250 = vmatprep.subr.bf16.mxu0 0
    %251 = vmatpush1.bf16.msra.mxu0 0
    %252 = vmatprep.subr.bf16.mxu0 0
    %253 = vmatpush1.bf16.msra.mxu0 0
    %254 = vmatprep.mubr.bf16.mxu0 0
    %255 = vmatmul.mubr.bf16.gmra.mrb[0].mxu0 %v172
    %v256 = vpop.f32.mrb[0].mxu0
    %v257 = vadd.f32 %v158, %v256
    %v258 = vpop.f32.mrb[0].mxu0
    %v259 = vpop.f32.mrb[0].mxu0
    %v260 = vadd.f32 %v158, %v259
    %v261 = vpop.f32.mrb[0].mxu0
    %262 = vmatprep.mubr.bf16.mxu0 0
    %263 = vmatmul.mubr.bf16.gmra.mrb[0].mxu0 %v173
    %v264 = vpop.f32.mrb[0].mxu0
    %v265 = vadd.f32 %v158, %v264
    %v266 = vpop.f32.mrb[0].mxu0
    %v267 = vpop.f32.mrb[0].mxu0
    %v268 = vpop.f32.mrb[0].mxu0
    %269 = vdwg.mxu0
    %v270 = vmax.f32 %v257, 0.0
    %v271 = vmax.f32 %v260, 0.0
    %v272 = vmax.f32 %v265, 0.0
    %v273 = vpack.c.bf16 %v271, %v270
    %v274 = vpack.c.bf16 %v272, %v272
    %v291 = vunpack.c.l.b16 %v137
    %v292 = vunpack.c.h.b16 %v137
    %v293 = vunpack.c.l.b16 %v138
    %v294 = vunpack.c.h.b16 %v138
    %v295 = vunpack.c.l.b16 %v139
    %v296 = vunpack.c.h.b16 %v139
    %v297 = vunpack.c.l.b16 %v140
    %v298 = vunpack.c.h.b16 %v140
    %v299 = vunpack.c.l.b16 %v141
    %v300 = vunpack.c.h.b16 %v141
    %v301 = vunpack.c.l.b16 %v142
    %v302 = vunpack.c.h.b16 %v142
    %v303 = vunpack.c.l.b16 %v143
    %v304 = vunpack.c.h.b16 %v143
    %v305 = vunpack.c.l.b16 %v144
    %v306 = vunpack.c.h.b16 %v144
    %v307 = vunpack.c.l.b16 %v145
    %v308 = vunpack.c.h.b16 %v145
    %v309 = vunpack.c.l.b16 %v146
    %v310 = vunpack.c.h.b16 %v146
    %v311 = vunpack.c.l.b16 %v147
    %v312 = vunpack.c.h.b16 %v147
    %v313 = vunpack.c.l.b16 %v148
    %v314 = vunpack.c.h.b16 %v148
    %v315 = vunpack.c.l.b16 %v149
    %v316 = vunpack.c.h.b16 %v149
    %v317 = vunpack.c.l.b16 %v150
    %v318 = vunpack.c.h.b16 %v150
    %v319 = vunpack.c.l.b16 %v151
    %v320 = vunpack.c.h.b16 %v151
    %v321 = vunpack.c.l.b16 %v152
    %v322 = vunpack.c.h.b16 %v152
    %v323 = vpack.c.b16 %v293, %v291
    %v324 = vpack.c.b16 %v294, %v292
    %v325 = vpack.c.b16 %v297, %v295
    %v326 = vpack.c.b16 %v298, %v296
    %v327 = vpack.c.b16 %v301, %v299
    %v328 = vpack.c.b16 %v302, %v300
    %v329 = vpack.c.b16 %v305, %v303
    %v330 = vpack.c.b16 %v306, %v304
    %v331 = vpack.c.b16 %v309, %v307
    %v332 = vpack.c.b16 %v310, %v308
    %v333 = vpack.c.b16 %v313, %v311
    %v334 = vpack.c.b16 %v314, %v312
    %v335 = vpack.c.b16 %v317, %v315
    %v336 = vpack.c.b16 %v318, %v316
    %v337 = vpack.c.b16 %v321, %v319
    %v338 = vpack.c.b16 %v322, %v320
    %355 = vmatprep.subr.bf16.mxu0 %v324
    %356 = vmatpush1.bf16.msra.mxu0 %v323
    %357 = vmatprep.subr.bf16.mxu0 %v326
    %358 = vmatpush1.bf16.msra.mxu0 %v325
    %359 = vmatprep.subr.bf16.mxu0 %v328
    %360 = vmatpush1.bf16.msra.mxu0 %v327
    %361 = vmatprep.subr.bf16.mxu0 %v330
    %362 = vmatpush1.bf16.msra.mxu0 %v329
    %363 = vmatprep.subr.bf16.mxu0 %v332
    %364 = vmatpush1.bf16.msra.mxu0 %v331
    %365 = vmatprep.subr.bf16.mxu0 %v334
    %366 = vmatpush1.bf16.msra.mxu0 %v333
    %367 = vmatprep.subr.bf16.mxu0 %v336
    %368 = vmatpush1.bf16.msra.mxu0 %v335
    %369 = vmatprep.subr.bf16.mxu0 %v338
    %370 = vmatpush1.bf16.msra.mxu0 %v337
    %371 = vmatprep.subr.bf16.mxu0 0
    %372 = vmatpush1.bf16.msra.mxu0 0
    %373 = vmatprep.subr.bf16.mxu0 0
    %374 = vmatpush1.bf16.msra.mxu0 0
    %375 = vmatprep.subr.bf16.mxu0 0
    %376 = vmatpush1.bf16.msra.mxu0 0
    %377 = vmatprep.subr.bf16.mxu0 0
    %378 = vmatpush1.bf16.msra.mxu0 0
    %379 = vmatprep.subr.bf16.mxu0 0
    %380 = vmatpush1.bf16.msra.mxu0 0
    %381 = vmatprep.subr.bf16.mxu0 0
    %382 = vmatpush1.bf16.msra.mxu0 0
    %383 = vmatprep.subr.bf16.mxu0 0
    %384 = vmatpush1.bf16.msra.mxu0 0
    %385 = vmatprep.subr.bf16.mxu0 0
    %386 = vmatpush1.bf16.msra.mxu0 0
    %387 = vmatprep.mubr.bf16.mxu0 0
    %388 = vmatmul.mubr.bf16.gmra.mrb[0].mxu0 %v273
    %v389 = vpop.f32.mrb[0].mxu0
    %v390 = vadd.f32 %v165, %v389
    %v391 = vpop.f32.mrb[0].mxu0
    %v392 = vadd.f32 %v169, %v391
    %v393 = vpop.f32.mrb[0].mxu0
    %v394 = vadd.f32 %v165, %v393
    %v395 = vpop.f32.mrb[0].mxu0
    %v396 = vadd.f32 %v169, %v395
    %397 = vmatprep.mubr.bf16.mxu0 0
    %398 = vmatmul.mubr.bf16.gmra.mrb[0].mxu0 %v274
    %v399 = vpop.f32.mrb[0].mxu0
    %v400 = vadd.f32 %v165, %v399
    %v401 = vpop.f32.mrb[0].mxu0
    %v402 = vadd.f32 %v169, %v401
    %v403 = vpop.f32.mrb[0].mxu0
    %v404 = vpop.f32.mrb[0].mxu0
    %405 = vdwg.mxu0
    %v406 = vmax.f32 %v390, 0.0
    %v407 = vmax.f32 %v394, 0.0
    %v408 = vmax.f32 %v400, 0.0
    %v409 = vxor.u32 %v392, 2147483648
    %v410 = vxor.u32 %v396, 2147483648
    %v411 = vxor.u32 %v402, 2147483648
    %v412 = vmul.f32 %v409, 1.442695
    %v413 = vpow.pop %v412
    %v414 = vmul.f32 %v410, 1.442695
    %v415 = vpow.pop %v414
    %v416 = vmul.f32 %v411, 1.442695
    %v417 = vpow.pop %v416
    %v418 = vadd.f32 %v413, 1.0
    %v419 = vadd.f32 %v415, 1.0
    %v420 = vadd.f32 %v417, 1.0
    %v421 = vrcp.pop %v418
    %v422 = vmul.f32 1.0, %v421
    %v423 = vrcp.pop %v419
    %v424 = vmul.f32 1.0, %v423
    %v425 = vrcp.pop %v420
    %v426 = vmul.f32 1.0, %v425
    %v427 = vlog2.pop %v422
    %v428 = vmul.f32 %v427, 0.6931472
    %v429 = vlog2.pop %v424
    %v430 = vmul.f32 %v429, 0.6931472
    %v431 = vlog2.pop %v426
    %v432 = vmul.f32 %v431, 0.6931472
    %v433 = vmax.f32 %v428, -100.0
    %v434 = vmax.f32 %v430, -100.0
    %v435 = vmax.f32 %v432, -100.0
    %v436 = vsub.f32 1.0, %v422
    %v437 = vsub.f32 1.0, %v424
    %v438 = vsub.f32 1.0, %v426
    %v439 = vlog2.pop %v436
    %v440 = vmul.f32 %v439, 0.6931472
    %v441 = vlog2.pop %v437
    %v442 = vmul.f32 %v441, 0.6931472
    %v443 = vlog2.pop %v438
    %v444 = vmul.f32 %v443, 0.6931472
    %v445 = vmax.f32 %v440, -100.0
    %v446 = vmax.f32 %v442, -100.0
    %v447 = vmax.f32 %v444, -100.0
    %v448 = vmul.f32 %v99, %v433
    %v449 = vmul.f32 %v100, %v434
    %v450 = vmul.f32 %v101, %v435
    %v451 = vsub.f32 1.0, %v99
    %v452 = vsub.f32 1.0, %v100
    %v453 = vsub.f32 1.0, %v101
    %v454 = vmul.f32 %v451, %v445
    %v455 = vmul.f32 %v452, %v446
    %v456 = vmul.f32 %v453, %v447
    %v457 = vadd.f32 %v448, %v454
    %v458 = vadd.f32 %v449, %v455
    %v459 = vadd.f32 %v450, %v456
    %v460 = vsub.f32 0.0, %v457
    %v461 = vsub.f32 0.0, %v458
    %v462 = vsub.f32 0.0, %v459
    %v463 = vpack.c.bf16 %v424, %v422
    %v464 = vpack.c.bf16 %v426, %v426
    %465 = vmatprep.subr.bf16.mxu0 0
    %466 = vmatpush1.bf16.msra.mxu0 %v206
    %467 = vmatprep.subr.bf16.mxu0 0
    %468 = vmatpush1.bf16.msra.mxu0 %v207
    %469 = vmatprep.subr.bf16.mxu0 0
    %470 = vmatpush1.bf16.msra.mxu0 %v208
    %471 = vmatprep.subr.bf16.mxu0 0
    %472 = vmatpush1.bf16.msra.mxu0 %v209
    %473 = vmatprep.subr.bf16.mxu0 0
    %474 = vmatpush1.bf16.msra.mxu0 %v210
    %475 = vmatprep.subr.bf16.mxu0 0
    %476 = vmatpush1.bf16.msra.mxu0 %v211
    %477 = vmatprep.subr.bf16.mxu0 0
    %478 = vmatpush1.bf16.msra.mxu0 %v212
    %479 = vmatprep.subr.bf16.mxu0 0
    %480 = vmatpush1.bf16.msra.mxu0 %v213
    %481 = vmatprep.subr.bf16.mxu0 0
    %482 = vmatpush1.bf16.msra.mxu0 0
    %483 = vmatprep.subr.bf16.mxu0 0
    %484 = vmatpush1.bf16.msra.mxu0 0
    %485 = vmatprep.subr.bf16.mxu0 0
    %486 = vmatpush1.bf16.msra.mxu0 0
    %487 = vmatprep.subr.bf16.mxu0 0
    %488 = vmatpush1.bf16.msra.mxu0 0
    %489 = vmatprep.subr.bf16.mxu0 0
    %490 = vmatpush1.bf16.msra.mxu0 0
    %491 = vmatprep.subr.bf16.mxu0 0
    %492 = vmatpush1.bf16.msra.mxu0 0
    %493 = vmatprep.subr.bf16.mxu0 0
    %494 = vmatpush1.bf16.msra.mxu0 0
    %495 = vmatprep.subr.bf16.mxu0 0
    %496 = vmatpush1.bf16.msra.mxu0 0
    %497 = vmatprep.mubr.bf16.mxu0 0
    %498 = vmatmul.mubr.bf16.gmra.mrb[0].mxu0 %v463
    %v499 = vpop.f32.mrb[0].mxu0
    %v500 = vadd.f32 %v158, %v499
    %v501 = vpop.f32.mrb[0].mxu0
    %v502 = vpop.f32.mrb[0].mxu0
    %v503 = vadd.f32 %v158, %v502
    %v504 = vpop.f32.mrb[0].mxu0
    %505 = vmatprep.mubr.bf16.mxu0 0
    %506 = vmatmul.mubr.bf16.gmra.mrb[0].mxu0 %v464
    %v507 = vpop.f32.mrb[0].mxu0
    %v508 = vadd.f32 %v158, %v507
    %v509 = vpop.f32.mrb[0].mxu0
    %v510 = vpop.f32.mrb[0].mxu0
    %v511 = vpop.f32.mrb[0].mxu0
    %512 = vdwg.mxu0
    %v513 = vpack.c.bf16 %v407, %v406
    %v514 = vpack.c.bf16 %v408, %v408
    %v531 = vunpack.c.l.b16 %v121
    %v532 = vunpack.c.l.b16 %v122
    %v533 = vunpack.c.l.b16 %v123
    %v534 = vunpack.c.l.b16 %v124
    %v535 = vunpack.c.l.b16 %v125
    %v536 = vunpack.c.l.b16 %v126
    %v537 = vunpack.c.l.b16 %v127
    %v538 = vunpack.c.l.b16 %v128
    %v539 = vunpack.c.l.b16 %v129
    %v540 = vunpack.c.l.b16 %v130
    %v541 = vunpack.c.l.b16 %v131
    %v542 = vunpack.c.l.b16 %v132
    %v543 = vunpack.c.l.b16 %v133
    %v544 = vunpack.c.l.b16 %v134
    %v545 = vunpack.c.l.b16 %v135
    %v546 = vunpack.c.l.b16 %v136
    %v547 = vpack.c.b16 %v532, %v531
    %v548 = vpack.c.b16 %v534, %v533
    %v549 = vpack.c.b16 %v536, %v535
    %v550 = vpack.c.b16 %v538, %v537
    %v551 = vpack.c.b16 %v540, %v539
    %v552 = vpack.c.b16 %v542, %v541
    %v553 = vpack.c.b16 %v544, %v543
    %v554 = vpack.c.b16 %v546, %v545
    %563 = vmatprep.subr.bf16.mxu0 0
    %564 = vmatpush1.bf16.msra.mxu0 %v547
    %565 = vmatprep.subr.bf16.mxu0 0
    %566 = vmatpush1.bf16.msra.mxu0 %v548
    %567 = vmatprep.subr.bf16.mxu0 0
    %568 = vmatpush1.bf16.msra.mxu0 %v549
    %569 = vmatprep.subr.bf16.mxu0 0
    %570 = vmatpush1.bf16.msra.mxu0 %v550
    %571 = vmatprep.subr.bf16.mxu0 0
    %572 = vmatpush1.bf16.msra.mxu0 %v551
    %573 = vmatprep.subr.bf16.mxu0 0
    %574 = vmatpush1.bf16.msra.mxu0 %v552
    %575 = vmatprep.subr.bf16.mxu0 0
    %576 = vmatpush1.bf16.msra.mxu0 %v553
    %577 = vmatprep.subr.bf16.mxu0 0
    %578 = vmatpush1.bf16.msra.mxu0 %v554
    %579 = vmatprep.subr.bf16.mxu0 0
    %580 = vmatpush1.bf16.msra.mxu0 0
    %581 = vmatprep.subr.bf16.mxu0 0
    %582 = vmatpush1.bf16.msra.mxu0 0
    %583 = vmatprep.subr.bf16.mxu0 0
    %584 = vmatpush1.bf16.msra.mxu0 0
    %585 = vmatprep.subr.bf16.mxu0 0
    %586 = vmatpush1.bf16.msra.mxu0 0
    %587 = vmatprep.subr.bf16.mxu0 0
    %588 = vmatpush1.bf16.msra.mxu0 0
    %589 = vmatprep.subr.bf16.mxu0 0
    %590 = vmatpush1.bf16.msra.mxu0 0
    %591 = vmatprep.subr.bf16.mxu0 0
    %592 = vmatpush1.bf16.msra.mxu0 0
    %593 = vmatprep.subr.bf16.mxu0 0
    %594 = vmatpush1.bf16.msra.mxu0 0
    %595 = vmatprep.mubr.bf16.mxu0 0
    %596 = vmatmul.mubr.bf16.gmra.mrb[0].mxu0 %v513
    %v597 = vpop.f32.mrb[0].mxu0
    %v598 = vadd.f32 0.0, %v597
    %v599 = vpop.f32.mrb[0].mxu0
    %v600 = vpop.f32.mrb[0].mxu0
    %v601 = vadd.f32 0.0, %v600
    %v602 = vpop.f32.mrb[0].mxu0
    %603 = vmatprep.mubr.bf16.mxu0 0
    %604 = vmatmul.mubr.bf16.gmra.mrb[0].mxu0 %v514
    %v605 = vpop.f32.mrb[0].mxu0
    %v606 = vadd.f32 0.0, %v605
    %v607 = vpop.f32.mrb[0].mxu0
    %v608 = vpop.f32.mrb[0].mxu0
    %v609 = vpop.f32.mrb[0].mxu0
    %610 = vdwg.mxu0
    %v611 = vadd.f32 %v500, %v598
    %v612 = vadd.f32 %v503, %v601
    %v613 = vadd.f32 %v508, %v606
    %v614 = vmax.f32 %v611, 0.0
    %v615 = vmax.f32 %v612, 0.0
    %v616 = vmax.f32 %v613, 0.0
    %v617 = vpack.c.bf16 %v615, %v614
    %v618 = vpack.c.bf16 %v616, %v616
    %619 = vmatprep.subr.bf16.mxu0 %v324
    %620 = vmatpush1.bf16.msra.mxu0 %v323
    %621 = vmatprep.subr.bf16.mxu0 %v326
    %622 = vmatpush1.bf16.msra.mxu0 %v325
    %623 = vmatprep.subr.bf16.mxu0 %v328
    %624 = vmatpush1.bf16.msra.mxu0 %v327
    %625 = vmatprep.subr.bf16.mxu0 %v330
    %626 = vmatpush1.bf16.msra.mxu0 %v329
    %627 = vmatprep.subr.bf16.mxu0 %v332
    %628 = vmatpush1.bf16.msra.mxu0 %v331
    %629 = vmatprep.subr.bf16.mxu0 %v334
    %630 = vmatpush1.bf16.msra.mxu0 %v333
    %631 = vmatprep.subr.bf16.mxu0 %v336
    %632 = vmatpush1.bf16.msra.mxu0 %v335
    %633 = vmatprep.subr.bf16.mxu0 %v338
    %634 = vmatpush1.bf16.msra.mxu0 %v337
    %635 = vmatprep.subr.bf16.mxu0 0
    %636 = vmatpush1.bf16.msra.mxu0 0
    %637 = vmatprep.subr.bf16.mxu0 0
    %638 = vmatpush1.bf16.msra.mxu0 0
    %639 = vmatprep.subr.bf16.mxu0 0
    %640 = vmatpush1.bf16.msra.mxu0 0
    %641 = vmatprep.subr.bf16.mxu0 0
    %642 = vmatpush1.bf16.msra.mxu0 0
    %643 = vmatprep.subr.bf16.mxu0 0
    %644 = vmatpush1.bf16.msra.mxu0 0
    %645 = vmatprep.subr.bf16.mxu0 0
    %646 = vmatpush1.bf16.msra.mxu0 0
    %647 = vmatprep.subr.bf16.mxu0 0
    %648 = vmatpush1.bf16.msra.mxu0 0
    %649 = vmatprep.subr.bf16.mxu0 0
    %650 = vmatpush1.bf16.msra.mxu0 0
    %651 = vmatprep.mubr.bf16.mxu0 0
    %652 = vmatmul.mubr.bf16.gmra.mrb[0].mxu0 %v617
    %v653 = vpop.f32.mrb[0].mxu0
    %v654 = vadd.f32 %v165, %v653
    %v655 = vpop.f32.mrb[0].mxu0
    %v656 = vadd.f32 %v169, %v655
    %v657 = vpop.f32.mrb[0].mxu0
    %v658 = vadd.f32 %v165, %v657
    %v659 = vpop.f32.mrb[0].mxu0
    %v660 = vadd.f32 %v169, %v659
    %661 = vmatprep.mubr.bf16.mxu0 0
    %662 = vmatmul.mubr.bf16.gmra.mrb[0].mxu0 %v618
    %v663 = vpop.f32.mrb[0].mxu0
    %v664 = vadd.f32 %v165, %v663
    %v665 = vpop.f32.mrb[0].mxu0
    %v666 = vadd.f32 %v169, %v665
    %v667 = vpop.f32.mrb[0].mxu0
    %v668 = vpop.f32.mrb[0].mxu0
    %669 = vdwg.mxu0
    %v670 = vmax.f32 %v654, 0.0
    %v671 = vmax.f32 %v658, 0.0
    %v672 = vmax.f32 %v664, 0.0
    %v673 = vxor.u32 %v656, 2147483648
    %v674 = vxor.u32 %v660, 2147483648
    %v675 = vxor.u32 %v666, 2147483648
    %v676 = vmul.f32 %v673, 1.442695
    %v677 = vpow.pop %v676
    %v678 = vmul.f32 %v674, 1.442695
    %v679 = vpow.pop %v678
    %v680 = vmul.f32 %v675, 1.442695
    %v681 = vpow.pop %v680
    %v682 = vadd.f32 %v677, 1.0
    %v683 = vadd.f32 %v679, 1.0
    %v684 = vadd.f32 %v681, 1.0
    %v685 = vrcp.pop %v682
    %v686 = vmul.f32 1.0, %v685
    %v687 = vrcp.pop %v683
    %v688 = vmul.f32 1.0, %v687
    %v689 = vrcp.pop %v684
    %v690 = vmul.f32 1.0, %v689
    %v691 = vlog2.pop %v686
    %v692 = vmul.f32 %v691, 0.6931472
    %v693 = vlog2.pop %v688
    %v694 = vmul.f32 %v693, 0.6931472
    %v695 = vlog2.pop %v690
    %v696 = vmul.f32 %v695, 0.6931472
    %v697 = vmax.f32 %v692, -100.0
    %v698 = vmax.f32 %v694, -100.0
    %v699 = vmax.f32 %v696, -100.0
    %v700 = vsub.f32 1.0, %v686
    %v701 = vsub.f32 1.0, %v688
    %v702 = vsub.f32 1.0, %v690
    %v703 = vlog2.pop %v700
    %v704 = vmul.f32 %v703, 0.6931472
    %v705 = vlog2.pop %v701
    %v706 = vmul.f32 %v705, 0.6931472
    %v707 = vlog2.pop %v702
    %v708 = vmul.f32 %v707, 0.6931472
    %v709 = vmax.f32 %v704, -100.0
    %v710 = vmax.f32 %v706, -100.0
    %v711 = vmax.f32 %v708, -100.0
    %v712 = vmul.f32 %v99, %v697
    %v713 = vmul.f32 %v100, %v698
    %v714 = vmul.f32 %v101, %v699
    %v715 = vmul.f32 %v451, %v709
    %v716 = vmul.f32 %v452, %v710
    %v717 = vmul.f32 %v453, %v711
    %v718 = vadd.f32 %v712, %v715
    %v719 = vadd.f32 %v713, %v716
    %v720 = vadd.f32 %v714, %v717
    %v721 = vsub.f32 %v460, %v718
    %v722 = vsub.f32 %v461, %v719
    %v723 = vsub.f32 %v462, %v720
    %v724 = vpack.c.bf16 %v688, %v686
    %v725 = vpack.c.bf16 %v690, %v690
    %726 = vmatprep.subr.bf16.mxu0 0
    %727 = vmatpush1.bf16.msra.mxu0 %v206
    %728 = vmatprep.subr.bf16.mxu0 0
    %729 = vmatpush1.bf16.msra.mxu0 %v207
    %730 = vmatprep.subr.bf16.mxu0 0
    %731 = vmatpush1.bf16.msra.mxu0 %v208
    %732 = vmatprep.subr.bf16.mxu0 0
    %733 = vmatpush1.bf16.msra.mxu0 %v209
    %734 = vmatprep.subr.bf16.mxu0 0
    %735 = vmatpush1.bf16.msra.mxu0 %v210
    %736 = vmatprep.subr.bf16.mxu0 0
    %737 = vmatpush1.bf16.msra.mxu0 %v211
    %738 = vmatprep.subr.bf16.mxu0 0
    %739 = vmatpush1.bf16.msra.mxu0 %v212
    %740 = vmatprep.subr.bf16.mxu0 0
    %741 = vmatpush1.bf16.msra.mxu0 %v213
    %742 = vmatprep.subr.bf16.mxu0 0
    %743 = vmatpush1.bf16.msra.mxu0 0
    %744 = vmatprep.subr.bf16.mxu0 0
    %745 = vmatpush1.bf16.msra.mxu0 0
    %746 = vmatprep.subr.bf16.mxu0 0
    %747 = vmatpush1.bf16.msra.mxu0 0
    %748 = vmatprep.subr.bf16.mxu0 0
    %749 = vmatpush1.bf16.msra.mxu0 0
    %750 = vmatprep.subr.bf16.mxu0 0
    %751 = vmatpush1.bf16.msra.mxu0 0
    %752 = vmatprep.subr.bf16.mxu0 0
    %753 = vmatpush1.bf16.msra.mxu0 0
    %754 = vmatprep.subr.bf16.mxu0 0
    %755 = vmatpush1.bf16.msra.mxu0 0
    %756 = vmatprep.subr.bf16.mxu0 0
    %757 = vmatpush1.bf16.msra.mxu0 0
    %758 = vmatprep.mubr.bf16.mxu0 0
    %759 = vmatmul.mubr.bf16.gmra.mrb[0].mxu0 %v724
    %v760 = vpop.f32.mrb[0].mxu0
    %v761 = vadd.f32 %v158, %v760
    %v762 = vpop.f32.mrb[0].mxu0
    %v763 = vpop.f32.mrb[0].mxu0
    %v764 = vadd.f32 %v158, %v763
    %v765 = vpop.f32.mrb[0].mxu0
    %766 = vmatprep.mubr.bf16.mxu0 0
    %767 = vmatmul.mubr.bf16.gmra.mrb[0].mxu0 %v725
    %v768 = vpop.f32.mrb[0].mxu0
    %v769 = vadd.f32 %v158, %v768
    %v770 = vpop.f32.mrb[0].mxu0
    %v771 = vpop.f32.mrb[0].mxu0
    %v772 = vpop.f32.mrb[0].mxu0
    %773 = vdwg.mxu0
    %v774 = vpack.c.bf16 %v671, %v670
    %v775 = vpack.c.bf16 %v672, %v672
    %776 = vmatprep.subr.bf16.mxu0 0
    %777 = vmatpush1.bf16.msra.mxu0 %v547
    %778 = vmatprep.subr.bf16.mxu0 0
    %779 = vmatpush1.bf16.msra.mxu0 %v548
    %780 = vmatprep.subr.bf16.mxu0 0
    %781 = vmatpush1.bf16.msra.mxu0 %v549
    %782 = vmatprep.subr.bf16.mxu0 0
    %783 = vmatpush1.bf16.msra.mxu0 %v550
    %784 = vmatprep.subr.bf16.mxu0 0
    %785 = vmatpush1.bf16.msra.mxu0 %v551
    %786 = vmatprep.subr.bf16.mxu0 0
    %787 = vmatpush1.bf16.msra.mxu0 %v552
    %788 = vmatprep.subr.bf16.mxu0 0
    %789 = vmatpush1.bf16.msra.mxu0 %v553
    %790 = vmatprep.subr.bf16.mxu0 0
    %791 = vmatpush1.bf16.msra.mxu0 %v554
    %792 = vmatprep.subr.bf16.mxu0 0
    %793 = vmatpush1.bf16.msra.mxu0 0
    %794 = vmatprep.subr.bf16.mxu0 0
    %795 = vmatpush1.bf16.msra.mxu0 0
    %796 = vmatprep.subr.bf16.mxu0 0
    %797 = vmatpush1.bf16.msra.mxu0 0
    %798 = vmatprep.subr.bf16.mxu0 0
    %799 = vmatpush1.bf16.msra.mxu0 0
    %800 = vmatprep.subr.bf16.mxu0 0
    %801 = vmatpush1.bf16.msra.mxu0 0
    %802 = vmatprep.subr.bf16.mxu0 0
    %803 = vmatpush1.bf16.msra.mxu0 0
    %804 = vmatprep.subr.bf16.mxu0 0
    %805 = vmatpush1.bf16.msra.mxu0 0
    %806 = vmatprep.subr.bf16.mxu0 0
    %807 = vmatpush1.bf16.msra.mxu0 0
    %808 = vmatprep.mubr.bf16.mxu0 0
    %809 = vmatmul.mubr.bf16.gmra.mrb[0].mxu0 %v774
    %v810 = vpop.f32.mrb[0].mxu0
    %v811 = vadd.f32 0.0, %v810
    %v812 = vpop.f32.mrb[0].mxu0
    %v813 = vpop.f32.mrb[0].mxu0
    %v814 = vadd.f32 0.0, %v813
    %v815 = vpop.f32.mrb[0].mxu0
    %816 = vmatprep.mubr.bf16.mxu0 0
    %817 = vmatmul.mubr.bf16.gmra.mrb[0].mxu0 %v775
    %v818 = vpop.f32.mrb[0].mxu0
    %v819 = vadd.f32 0.0, %v818
    %v820 = vpop.f32.mrb[0].mxu0
    %v821 = vpop.f32.mrb[0].mxu0
    %v822 = vpop.f32.mrb[0].mxu0
    %823 = vdwg.mxu0
    %v824 = vadd.f32 %v761, %v811
    %v825 = vadd.f32 %v764, %v814
    %v826 = vadd.f32 %v769, %v819
    %v827 = vmax.f32 %v824, 0.0
    %v828 = vmax.f32 %v825, 0.0
    %v829 = vmax.f32 %v826, 0.0
    %v830 = vpack.c.bf16 %v828, %v827
    %v831 = vpack.c.bf16 %v829, %v829
    %832 = vmatprep.subr.bf16.mxu0 %v324
    %833 = vmatpush1.bf16.msra.mxu0 %v323
    %834 = vmatprep.subr.bf16.mxu0 %v326
    %835 = vmatpush1.bf16.msra.mxu0 %v325
    %836 = vmatprep.subr.bf16.mxu0 %v328
    %837 = vmatpush1.bf16.msra.mxu0 %v327
    %838 = vmatprep.subr.bf16.mxu0 %v330
    %839 = vmatpush1.bf16.msra.mxu0 %v329
    %840 = vmatprep.subr.bf16.mxu0 %v332
    %841 = vmatpush1.bf16.msra.mxu0 %v331
    %842 = vmatprep.subr.bf16.mxu0 %v334
    %843 = vmatpush1.bf16.msra.mxu0 %v333
    %844 = vmatprep.subr.bf16.mxu0 %v336
    %845 = vmatpush1.bf16.msra.mxu0 %v335
    %846 = vmatprep.subr.bf16.mxu0 %v338
    %847 = vmatpush1.bf16.msra.mxu0 %v337
    %848 = vmatprep.subr.bf16.mxu0 0
    %849 = vmatpush1.bf16.msra.mxu0 0
    %850 = vmatprep.subr.bf16.mxu0 0
    %851 = vmatpush1.bf16.msra.mxu0 0
    %852 = vmatprep.subr.bf16.mxu0 0
    %853 = vmatpush1.bf16.msra.mxu0 0
    %854 = vmatprep.subr.bf16.mxu0 0
    %855 = vmatpush1.bf16.msra.mxu0 0
    %856 = vmatprep.subr.bf16.mxu0 0
    %857 = vmatpush1.bf16.msra.mxu0 0
    %858 = vmatprep.subr.bf16.mxu0 0
    %859 = vmatpush1.bf16.msra.mxu0 0
    %860 = vmatprep.subr.bf16.mxu0 0
    %861 = vmatpush1.bf16.msra.mxu0 0
    %862 = vmatprep.subr.bf16.mxu0 0
    %863 = vmatpush1.bf16.msra.mxu0 0
    %864 = vmatprep.mubr.bf16.mxu0 0
    %865 = vmatmul.mubr.bf16.gmra.mrb[0].mxu0 %v830
    %v866 = vpop.f32.mrb[0].mxu0
    %v867 = vadd.f32 %v165, %v866
    %v868 = vpop.f32.mrb[0].mxu0
    %v869 = vadd.f32 %v169, %v868
    %v870 = vpop.f32.mrb[0].mxu0
    %v871 = vadd.f32 %v165, %v870
    %v872 = vpop.f32.mrb[0].mxu0
    %v873 = vadd.f32 %v169, %v872
    %874 = vmatprep.mubr.bf16.mxu0 0
    %875 = vmatmul.mubr.bf16.gmra.mrb[0].mxu0 %v831
    %v876 = vpop.f32.mrb[0].mxu0
    %v877 = vadd.f32 %v165, %v876
    %v878 = vpop.f32.mrb[0].mxu0
    %v879 = vadd.f32 %v169, %v878
    %v880 = vpop.f32.mrb[0].mxu0
    %v881 = vpop.f32.mrb[0].mxu0
    %882 = vdwg.mxu0
    %v883 = vmax.f32 %v867, 0.0
    %v884 = vmax.f32 %v871, 0.0
    %v885 = vmax.f32 %v877, 0.0
    %v886 = vxor.u32 %v869, 2147483648
    %v887 = vxor.u32 %v873, 2147483648
    %v888 = vxor.u32 %v879, 2147483648
    %v889 = vmul.f32 %v886, 1.442695
    %v890 = vpow.pop %v889
    %v891 = vmul.f32 %v887, 1.442695
    %v892 = vpow.pop %v891
    %v893 = vmul.f32 %v888, 1.442695
    %v894 = vpow.pop %v893
    %v895 = vadd.f32 %v890, 1.0
    %v896 = vadd.f32 %v892, 1.0
    %v897 = vadd.f32 %v894, 1.0
    %v898 = vrcp.pop %v895
    %v899 = vmul.f32 1.0, %v898
    %v900 = vrcp.pop %v896
    %v901 = vmul.f32 1.0, %v900
    %v902 = vrcp.pop %v897
    %v903 = vmul.f32 1.0, %v902
    %v904 = vlog2.pop %v899
    %v905 = vmul.f32 %v904, 0.6931472
    %v906 = vlog2.pop %v901
    %v907 = vmul.f32 %v906, 0.6931472
    %v908 = vlog2.pop %v903
    %v909 = vmul.f32 %v908, 0.6931472
    %v910 = vmax.f32 %v905, -100.0
    %v911 = vmax.f32 %v907, -100.0
    %v912 = vmax.f32 %v909, -100.0
    %v913 = vsub.f32 1.0, %v899
    %v914 = vsub.f32 1.0, %v901
    %v915 = vsub.f32 1.0, %v903
    %v916 = vlog2.pop %v913
    %v917 = vmul.f32 %v916, 0.6931472
    %v918 = vlog2.pop %v914
    %v919 = vmul.f32 %v918, 0.6931472
    %v920 = vlog2.pop %v915
    %v921 = vmul.f32 %v920, 0.6931472
    %v922 = vmax.f32 %v917, -100.0
    %v923 = vmax.f32 %v919, -100.0
    %v924 = vmax.f32 %v921, -100.0
    %v925 = vmul.f32 %v99, %v910
    %v926 = vmul.f32 %v100, %v911
    %v927 = vmul.f32 %v101, %v912
    %v928 = vmul.f32 %v451, %v922
    %v929 = vmul.f32 %v452, %v923
    %v930 = vmul.f32 %v453, %v924
    %v931 = vadd.f32 %v925, %v928
    %v932 = vadd.f32 %v926, %v929
    %v933 = vadd.f32 %v927, %v930
    %v934 = vsub.f32 %v721, %v931
    %v935 = vsub.f32 %v722, %v932
    %v936 = vsub.f32 %v723, %v933
    %v937 = vpack.c.bf16 %v901, %v899
    %v938 = vpack.c.bf16 %v903, %v903
    %939 = vmatprep.subr.bf16.mxu0 0
    %940 = vmatpush1.bf16.msra.mxu0 %v206
    %941 = vmatprep.subr.bf16.mxu0 0
    %942 = vmatpush1.bf16.msra.mxu0 %v207
    %943 = vmatprep.subr.bf16.mxu0 0
    %944 = vmatpush1.bf16.msra.mxu0 %v208
    %945 = vmatprep.subr.bf16.mxu0 0
    %946 = vmatpush1.bf16.msra.mxu0 %v209
    %947 = vmatprep.subr.bf16.mxu0 0
    %948 = vmatpush1.bf16.msra.mxu0 %v210
    %949 = vmatprep.subr.bf16.mxu0 0
    %950 = vmatpush1.bf16.msra.mxu0 %v211
    %951 = vmatprep.subr.bf16.mxu0 0
    %952 = vmatpush1.bf16.msra.mxu0 %v212
    %953 = vmatprep.subr.bf16.mxu0 0
    %954 = vmatpush1.bf16.msra.mxu0 %v213
    %955 = vmatprep.subr.bf16.mxu0 0
    %956 = vmatpush1.bf16.msra.mxu0 0
    %957 = vmatprep.subr.bf16.mxu0 0
    %958 = vmatpush1.bf16.msra.mxu0 0
    %959 = vmatprep.subr.bf16.mxu0 0
    %960 = vmatpush1.bf16.msra.mxu0 0
    %961 = vmatprep.subr.bf16.mxu0 0
    %962 = vmatpush1.bf16.msra.mxu0 0
    %963 = vmatprep.subr.bf16.mxu0 0
    %964 = vmatpush1.bf16.msra.mxu0 0
    %965 = vmatprep.subr.bf16.mxu0 0
    %966 = vmatpush1.bf16.msra.mxu0 0
    %967 = vmatprep.subr.bf16.mxu0 0
    %968 = vmatpush1.bf16.msra.mxu0 0
    %969 = vmatprep.subr.bf16.mxu0 0
    %970 = vmatpush1.bf16.msra.mxu0 0
    %971 = vmatprep.mubr.bf16.mxu0 0
    %972 = vmatmul.mubr.bf16.gmra.mrb[0].mxu0 %v937
    %v973 = vpop.f32.mrb[0].mxu0
    %v974 = vadd.f32 %v158, %v973
    %v975 = vpop.f32.mrb[0].mxu0
    %v976 = vpop.f32.mrb[0].mxu0
    %v977 = vadd.f32 %v158, %v976
    %v978 = vpop.f32.mrb[0].mxu0
    %979 = vmatprep.mubr.bf16.mxu0 0
    %980 = vmatmul.mubr.bf16.gmra.mrb[0].mxu0 %v938
    %v981 = vpop.f32.mrb[0].mxu0
    %v982 = vadd.f32 %v158, %v981
    %v983 = vpop.f32.mrb[0].mxu0
    %v984 = vpop.f32.mrb[0].mxu0
    %v985 = vpop.f32.mrb[0].mxu0
    %986 = vdwg.mxu0
    %v987 = vpack.c.bf16 %v884, %v883
    %v988 = vpack.c.bf16 %v885, %v885
    %989 = vmatprep.subr.bf16.mxu0 0
    %990 = vmatpush1.bf16.msra.mxu0 %v547
    %991 = vmatprep.subr.bf16.mxu0 0
    %992 = vmatpush1.bf16.msra.mxu0 %v548
    %993 = vmatprep.subr.bf16.mxu0 0
    %994 = vmatpush1.bf16.msra.mxu0 %v549
    %995 = vmatprep.subr.bf16.mxu0 0
    %996 = vmatpush1.bf16.msra.mxu0 %v550
    %997 = vmatprep.subr.bf16.mxu0 0
    %998 = vmatpush1.bf16.msra.mxu0 %v551
    %999 = vmatprep.subr.bf16.mxu0 0
    %1000 = vmatpush1.bf16.msra.mxu0 %v552
    %1001 = vmatprep.subr.bf16.mxu0 0
    %1002 = vmatpush1.bf16.msra.mxu0 %v553
    %1003 = vmatprep.subr.bf16.mxu0 0
    %1004 = vmatpush1.bf16.msra.mxu0 %v554
    %1005 = vmatprep.subr.bf16.mxu0 0
    %1006 = vmatpush1.bf16.msra.mxu0 0
    %1007 = vmatprep.subr.bf16.mxu0 0
    %1008 = vmatpush1.bf16.msra.mxu0 0
    %1009 = vmatprep.subr.bf16.mxu0 0
    %1010 = vmatpush1.bf16.msra.mxu0 0
    %1011 = vmatprep.subr.bf16.mxu0 0
    %1012 = vmatpush1.bf16.msra.mxu0 0
    %1013 = vmatprep.subr.bf16.mxu0 0
    %1014 = vmatpush1.bf16.msra.mxu0 0
    %1015 = vmatprep.subr.bf16.mxu0 0
    %1016 = vmatpush1.bf16.msra.mxu0 0
    %1017 = vmatprep.subr.bf16.mxu0 0
    %1018 = vmatpush1.bf16.msra.mxu0 0
    %1019 = vmatprep.subr.bf16.mxu0 0
    %1020 = vmatpush1.bf16.msra.mxu0 0
    %1021 = vmatprep.mubr.bf16.mxu0 0
    %1022 = vmatmul.mubr.bf16.gmra.mrb[0].mxu0 %v987
    %v1023 = vpop.f32.mrb[0].mxu0
    %v1024 = vadd.f32 0.0, %v1023
    %v1025 = vpop.f32.mrb[0].mxu0
    %v1026 = vpop.f32.mrb[0].mxu0
    %v1027 = vadd.f32 0.0, %v1026
    %v1028 = vpop.f32.mrb[0].mxu0
    %1029 = vmatprep.mubr.bf16.mxu0 0
    %1030 = vmatmul.mubr.bf16.gmra.mrb[0].mxu0 %v988
    %v1031 = vpop.f32.mrb[0].mxu0
    %v1032 = vadd.f32 0.0, %v1031
    %v1033 = vpop.f32.mrb[0].mxu0
    %v1034 = vpop.f32.mrb[0].mxu0
    %v1035 = vpop.f32.mrb[0].mxu0
    %1036 = vdwg.mxu0
    %v1037 = vadd.f32 %v974, %v1024
    %v1038 = vadd.f32 %v977, %v1027
    %v1039 = vadd.f32 %v982, %v1032
    %v1040 = vmax.f32 %v1037, 0.0
    %v1041 = vmax.f32 %v1038, 0.0
    %v1042 = vmax.f32 %v1039, 0.0
    %v1043 = vpack.c.bf16 %v1041, %v1040
    %v1044 = vpack.c.bf16 %v1042, %v1042
    %1045 = vmatprep.subr.bf16.mxu0 %v324
    %1046 = vmatpush1.bf16.msra.mxu0 %v323
    %1047 = vmatprep.subr.bf16.mxu0 %v326
    %1048 = vmatpush1.bf16.msra.mxu0 %v325
    %1049 = vmatprep.subr.bf16.mxu0 %v328
    %1050 = vmatpush1.bf16.msra.mxu0 %v327
    %1051 = vmatprep.subr.bf16.mxu0 %v330
    %1052 = vmatpush1.bf16.msra.mxu0 %v329
    %1053 = vmatprep.subr.bf16.mxu0 %v332
    %1054 = vmatpush1.bf16.msra.mxu0 %v331
    %1055 = vmatprep.subr.bf16.mxu0 %v334
    %1056 = vmatpush1.bf16.msra.mxu0 %v333
    %1057 = vmatprep.subr.bf16.mxu0 %v336
    %1058 = vmatpush1.bf16.msra.mxu0 %v335
    %1059 = vmatprep.subr.bf16.mxu0 %v338
    %1060 = vmatpush1.bf16.msra.mxu0 %v337
    %1061 = vmatprep.subr.bf16.mxu0 0
    %1062 = vmatpush1.bf16.msra.mxu0 0
    %1063 = vmatprep.subr.bf16.mxu0 0
    %1064 = vmatpush1.bf16.msra.mxu0 0
    %1065 = vmatprep.subr.bf16.mxu0 0
    %1066 = vmatpush1.bf16.msra.mxu0 0
    %1067 = vmatprep.subr.bf16.mxu0 0
    %1068 = vmatpush1.bf16.msra.mxu0 0
    %1069 = vmatprep.subr.bf16.mxu0 0
    %1070 = vmatpush1.bf16.msra.mxu0 0
    %1071 = vmatprep.subr.bf16.mxu0 0
    %1072 = vmatpush1.bf16.msra.mxu0 0
    %1073 = vmatprep.subr.bf16.mxu0 0
    %1074 = vmatpush1.bf16.msra.mxu0 0
    %1075 = vmatprep.subr.bf16.mxu0 0
    %1076 = vmatpush1.bf16.msra.mxu0 0
    %1077 = vmatprep.mubr.bf16.mxu0 0
    %1078 = vmatmul.mubr.bf16.gmra.mrb[0].mxu0 %v1043
    %v1079 = vpop.f32.mrb[0].mxu0
    %v1080 = vpop.f32.mrb[0].mxu0
    %v1081 = vadd.f32 %v169, %v1080
    %v1082 = vpop.f32.mrb[0].mxu0
    %v1083 = vpop.f32.mrb[0].mxu0
    %v1084 = vadd.f32 %v169, %v1083
    %1085 = vmatprep.mubr.bf16.mxu0 0
    %1086 = vmatmul.mubr.bf16.gmra.mrb[0].mxu0 %v1044
    %v1087 = vpop.f32.mrb[0].mxu0
    %v1088 = vpop.f32.mrb[0].mxu0
    %v1089 = vadd.f32 %v169, %v1088
    %v1090 = vpop.f32.mrb[0].mxu0
    %v1091 = vpop.f32.mrb[0].mxu0
    %1092 = vdwg.mxu0
    %v1093 = vxor.u32 %v1081, 2147483648
    %v1094 = vxor.u32 %v1084, 2147483648
    %v1095 = vxor.u32 %v1089, 2147483648
    %v1096 = vmul.f32 %v1093, 1.442695
    %v1097 = vpow.pop %v1096
    %v1098 = vmul.f32 %v1094, 1.442695
    %v1099 = vpow.pop %v1098
    %v1100 = vmul.f32 %v1095, 1.442695
    %v1101 = vpow.pop %v1100
    %v1102 = vadd.f32 %v1097, 1.0
    %v1103 = vadd.f32 %v1099, 1.0
    %v1104 = vadd.f32 %v1101, 1.0
    %v1105 = vrcp.pop %v1102
    %v1106 = vmul.f32 1.0, %v1105
    %v1107 = vrcp.pop %v1103
    %v1108 = vmul.f32 1.0, %v1107
    %v1109 = vrcp.pop %v1104
    %v1110 = vmul.f32 1.0, %v1109
    %v1111 = vlog2.pop %v1106
    %v1112 = vmul.f32 %v1111, 0.6931472
    %v1113 = vlog2.pop %v1108
    %v1114 = vmul.f32 %v1113, 0.6931472
    %v1115 = vlog2.pop %v1110
    %v1116 = vmul.f32 %v1115, 0.6931472
    %v1117 = vmax.f32 %v1112, -100.0
    %v1118 = vmax.f32 %v1114, -100.0
    %v1119 = vmax.f32 %v1116, -100.0
    %v1120 = vsub.f32 1.0, %v1106
    %v1121 = vsub.f32 1.0, %v1108
    %v1122 = vsub.f32 1.0, %v1110
    %v1123 = vlog2.pop %v1120
    %v1124 = vmul.f32 %v1123, 0.6931472
    %v1125 = vlog2.pop %v1121
    %v1126 = vmul.f32 %v1125, 0.6931472
    %v1127 = vlog2.pop %v1122
    %v1128 = vmul.f32 %v1127, 0.6931472
    %v1129 = vmax.f32 %v1124, -100.0
    %v1130 = vmax.f32 %v1126, -100.0
    %v1131 = vmax.f32 %v1128, -100.0
    %v1132 = vmul.f32 %v99, %v1117
    %v1133 = vmul.f32 %v100, %v1118
    %v1134 = vmul.f32 %v101, %v1119
    %v1135 = vmul.f32 %v451, %v1129
    %v1136 = vmul.f32 %v452, %v1130
    %v1137 = vmul.f32 %v453, %v1131
    %v1138 = vadd.f32 %v1132, %v1135
    %v1139 = vadd.f32 %v1133, %v1136
    %v1140 = vadd.f32 %v1134, %v1137
    %v1141 = vsub.f32 %v934, %v1138
    %v1142 = vsub.f32 %v935, %v1139
    %v1143 = vsub.f32 %v936, %v1140
    %v1144 = vmul.f32 %v1141, %v102
    %v1145 = vmul.f32 %v1142, %v103
    %v1146 = vmul.f32 %v1143, %v104
    %1147 = vadd.xlane.f32.xlu0 %v1144
    %v1148 = vpop.xlane.xlu0 %1147
    %1149 = vadd.xlane.f32.xlu0 %v1145
    %v1150 = vpop.xlane.xlu0 %1149
    %1151 = vadd.xlane.f32.xlu0 %v1146
    %v1152 = vpop.xlane.xlu0 %1151
    %v1153 = vadd.f32 %v1148, %v1150
    %v1154 = vadd.f32 %v1153, %v1152
    %v1155 = vrot.slane %v1154, 4
    %v1156 = vadd.f32 %v1154, %v1155
    %v1157 = vrot.slane %v1156, 2
    %v1158 = vadd.f32 %v1156, %v1157
    %v1159 = vrot.slane %v1158, 1
    %v1160 = vadd.f32 %v1158, %v1159
    %v1161 = vmul.f32 %v1160, 0.015625
    %vm1162 = vcmask 0
    %1163 = vst.msk [vmem:[#allocation12] sm:$0x1] %vm1162, %v1161
    %1164 = vst [vmem:[#allocation11] sm:$0xff] %v1040
    %1165 = vst [vmem:[#allocation11 + $0x8] sm:$0xff] %v1041
    %1166 = vst [vmem:[#allocation11 + $0x10] sm:$0xff] %v1042
    // Predicated region
    $region50: #{tpu_custom_call.1} parent=1 // pred_check
      _
    $region51: #{tpu_custom_call.1} parent=1 // pred_check_branch
      %1168 = sbr.rel (0) target = $region53
    $region52: #{tpu_custom_call.1} parent=1 // pred_region
      %s1170 = ssub.s32 384, 384
      %1171 = vsyncadd [#allocation4], %s1170
      %s1172 = sshll.u32 [#allocation11], 4
      %s1173 = int_to_ptr.vmem [resolvable:$true] %s1172
      %1178 = dma.vmem_to_hbm [thread:$0]  %s1173, 384, %s7, [#allocation4], 128, 128, 8
    $region53: #{tpu_custom_call.1} parent=1 // pred_fallthru
      _
    // Predicated region
    $region54: #{tpu_custom_call.1} parent=1 // pred_check
      _
    $region55: #{tpu_custom_call.1} parent=1 // pred_check_branch
      %1180 = sbr.rel (0) target = $region57
    $region56: #{tpu_custom_call.1} parent=1 // pred_region
      %s1182 = ssub.s32 16, 16
      %1183 = vsyncadd [#allocation13], %s1182
      %s1185 = sshll.u32 [#allocation12], 4
      %s1186 = int_to_ptr.vmem [resolvable:$true] %s1185
      %1188 = dma.vmem_to_hbm [thread:$0]  %s1186, 16, %s8, [#allocation13]
    $region57: #{tpu_custom_call.1} parent=1 // pred_fallthru
      _
    // Predicated region
    $region58: #{tpu_custom_call.1} parent=1 // pred_check
      _
    $region59: #{tpu_custom_call.1} parent=1 // pred_check_branch
      %1190 = sbr.rel (0) target = $region61
    $region60: #{tpu_custom_call.1} parent=1 // pred_region
      %1191 = dma.done [#allocation4], 384
    $region61: #{tpu_custom_call.1} parent=1 // pred_fallthru
      _
    // Predicated region
    $region62: #{tpu_custom_call.1} parent=1 // pred_check
      _
    $region63: #{tpu_custom_call.1} parent=1 // pred_check_branch
      %1193 = sbr.rel (0) target = $region65
    $region64: #{tpu_custom_call.1} parent=1 // pred_region
      %1194 = dma.done [#allocation13], 16
    $region65: #{tpu_custom_call.1} parent=1 // pred_fallthru
      _
    %1195 = vsyncpa [#allocation3], 1
    %1196 = vsyncpa [#allocation6], 1
    %1197 = vsyncpa [#allocation9], 1
    %1198 = vsyncpa [#allocation4], 1
    %1199 = vsyncpa [#allocation13], 1

</llo_original>
